<compile_context>
chip_gen: v5e
topology: v5e:2x2
jax: 0.10.0
libtpu: 0.0.40
codegen_flags: <defaults>
</compile_context>

<pallas_src>
import functools

import jax
import jax.numpy as jnp
from jax.experimental import pallas as pl
from jax.experimental.pallas import tpu as pltpu

_F32 = jnp.float32


# ---------------------------------------------------------------------------
# In-kernel helpers
# ---------------------------------------------------------------------------

def _dot(a, b):
    return jnp.dot(a, b, preferred_element_type=jnp.float32)


def _silu(x):
    return x * jax.nn.sigmoid(x)


def _l2norm(x, eps=1e-12):
    # F.normalize: x / max(||x||, eps) == x * rsqrt(max(sum(x^2), eps^2))
    s = jnp.sum(x * x, axis=-1, keepdims=True)
    return x * jax.lax.rsqrt(jnp.maximum(s, eps * eps))


# ---------------------------------------------------------------------------
# The fused kernel: prologue + n_layers x E_GCL + epilogue
# ---------------------------------------------------------------------------

def _egnn_fused_kernel(
    # constant (loaded once) inputs
    blkid_ref, row_e1_ref, col_e1_ref, row_1e_ref, batch_ref,
    h_atoms_ref, z_atoms_ref, eattr_ref,
    win_ref, bin_ref, wout_ref, bout_ref,
    # per-layer (streamed along the grid) weights
    ew1_ref, eb1_ref, ew2_ref, eb2_ref,
    cw1_ref, cb1_ref, cw2r_ref,
    nw1_ref, nb1_ref, nw2_ref, nb2_ref,
    # outputs
    hblk_ref, blkrep_ref, graphrep_ref,
    # scratch: carried [h | x] slab
    hx_s,
):
    layer = pl.program_id(0)
    n_blocks, hp3 = hx_s.shape
    hidden = hp3 - 3
    n_edges = row_e1_ref.shape[0]
    n_atoms = h_atoms_ref.shape[0]

    # ---- prologue (layer 0): scatter_mean(atoms->blocks) + embedding_in ----
    @pl.when(layer == 0)
    def _prologue():
        iota_b = jax.lax.broadcasted_iota(jnp.int32, (n_blocks, n_atoms), 0)
        mask = (iota_b == blkid_ref[...]).astype(_F32)            # [B, A]
        cnt = jnp.sum(mask, axis=1, keepdims=True)
        mmean = mask / jnp.maximum(cnt, 1.0)                      # scatter_mean
        hb = _dot(mmean, h_atoms_ref[...])                        # [B, H]
        x0 = _dot(mmean, z_atoms_ref[...])                        # [B, 3]
        hblk_ref[...] = hb
        h0 = _dot(hb, win_ref[...]) + bin_ref[...]                # embedding_in
        hx_s[...] = jnp.concatenate([h0, x0], axis=-1)

    # ---- one E_GCL layer (runs at every grid step) --------------------------
    hx = hx_s[...]                                                # [N, H+3]
    h = hx[:, :hidden]
    x = hx[:, hidden:]

    # 0/1 gather & segment masks, built in-register from int32 indices
    iota_en = jax.lax.broadcasted_iota(jnp.int32, (n_edges, n_blocks), 1)
    grow = (iota_en == row_e1_ref[...]).astype(_F32)              # [E, N]
    gcol = (iota_en == col_e1_ref[...]).astype(_F32)              # [E, N]
    iota_ne = jax.lax.broadcasted_iota(jnp.int32, (n_blocks, n_edges), 0)
    ssum = (iota_ne == row_1e_ref[...]).astype(_F32)              # [N, E]
    inv_cnt = 1.0 / jnp.maximum(jnp.sum(ssum, axis=1, keepdims=True), 1.0)

    # endpoint gathers of the combined [h | x] slab (2 MXU dots, not 4)
    hx_i = _dot(grow, hx)                                         # [E, H+3]
    hx_j = _dot(gcol, hx)
    h_i, x_i = hx_i[:, :hidden], hx_i[:, hidden:]
    h_j, x_j = hx_j[:, :hidden], hx_j[:, hidden:]

    # coord2radial
    diff = x_i - x_j                                              # [E, 3]
    radial = jnp.sum(diff * diff, axis=-1, keepdims=True)         # [E, 1]

    # edge model: one K=(2H+1+es) MXU pass on the concatenated input
    edge_in = jnp.concatenate([h_i, h_j, radial, eattr_ref[...]], axis=-1)
    m = _silu(_dot(edge_in, ew1_ref[...]) + eb1_ref[...])
    m = _silu(_dot(m, ew2_ref[...]) + eb2_ref[...])               # [E, H]

    # coord model (coords_agg='mean', no tanh); phi via VPU mul + lane reduce
    c = _silu(_dot(m, cw1_ref[...]) + cb1_ref[...])
    phi = jnp.sum(c * cw2r_ref[...], axis=-1, keepdims=True)      # [E, 1]
    trans = diff * phi                                            # [E, 3]

    # shared segment-sum for messages and coord updates
    agg = _dot(ssum, jnp.concatenate([m, trans], axis=-1))        # [N, H+3]
    agg_m = agg[:, :hidden]
    x_new = x + agg[:, hidden:] * inv_cnt                         # mean agg

    # node model: one K=2H MXU pass + residual
    node_in = jnp.concatenate([h, agg_m], axis=-1)                # [N, 2H]
    out = _silu(_dot(node_in, nw1_ref[...]) + nb1_ref[...])
    out = _dot(out, nw2_ref[...]) + nb2_ref[...]
    h_new = h + out

    hx_s[...] = jnp.concatenate([h_new, x_new], axis=-1)

    # ---- epilogue (last layer): embedding_out + normalize + pooling --------
    @pl.when(layer == pl.num_programs(0) - 1)
    def _epilogue():
        blk = _l2norm(_dot(h_new, wout_ref[...]) + bout_ref[...])
        blkrep_ref[...] = blk
        n_graphs = graphrep_ref.shape[0]
        iota_g = jax.lax.broadcasted_iota(jnp.int32, (n_graphs, n_blocks), 0)
        sbatch = (iota_g == batch_ref[...]).astype(_F32)          # [G, B]
        graphrep_ref[...] = _l2norm(_dot(sbatch, blk))


# ---------------------------------------------------------------------------
# Parameter initialization (matches nn.Linear defaults; coord_mlp last layer
# is xavier_uniform with gain=0.001, bias-free, as in the EGNN reference).
# Per-layer weights are stacked on a leading layer axis for the grid.
# ---------------------------------------------------------------------------

def init_linear(key, fan_in, fan_out):
    kw, kb = jax.random.split(key)
    bound = fan_in ** -0.5
    w = jax.random.uniform(kw, (fan_in, fan_out), _F32, -bound, bound)
    b = jax.random.uniform(kb, (1, fan_out), _F32, -bound, bound)
    return w, b


def init_egnn_params(key, hidden, edge_size, n_layers):
    keys = jax.random.split(key, 2 + n_layers)
    win, bin_ = init_linear(keys[0], hidden, hidden)
    wout, bout = init_linear(keys[1], hidden, hidden)
    edge_in = 2 * hidden + 1 + edge_size
    ew1, eb1, ew2, eb2 = [], [], [], []
    cw1, cb1, cw2r = [], [], []
    nw1, nb1, nw2, nb2 = [], [], [], []
    for i in range(n_layers):
        k = jax.random.split(keys[2 + i], 6)
        w, b = init_linear(k[0], edge_in, hidden); ew1.append(w); eb1.append(b)
        w, b = init_linear(k[1], hidden, hidden); ew2.append(w); eb2.append(b)
        w, b = init_linear(k[2], 2 * hidden, hidden); nw1.append(w); nb1.append(b)
        w, b = init_linear(k[3], hidden, hidden); nw2.append(w); nb2.append(b)
        w, b = init_linear(k[4], hidden, hidden); cw1.append(w); cb1.append(b)
        xav = 0.001 * (6.0 / (hidden + 1)) ** 0.5                 # gain=0.001
        # stored as the [1, H] row used by the VPU reduce (== PyTorch weight)
        cw2r.append(jax.random.uniform(k[5], (1, hidden), _F32, -xav, xav))
    stack = lambda xs: jnp.stack(xs, axis=0)
    return {
        "emb_in_w": win, "emb_in_b": bin_,
        "emb_out_w": wout, "emb_out_b": bout,
        "ew1": stack(ew1), "eb1": stack(eb1),
        "ew2": stack(ew2), "eb2": stack(eb2),
        "cw1": stack(cw1), "cb1": stack(cb1), "cw2r": stack(cw2r),
        "nw1": stack(nw1), "nb1": stack(nb1),
        "nw2": stack(nw2), "nb2": stack(nb2),
    }


# ---------------------------------------------------------------------------
# Forward pass (one pallas_call)
# ---------------------------------------------------------------------------

@functools.partial(jax.jit, static_argnames=("num_blocks", "num_graphs"))
def egnn_encoder_forward(params, H, Z, block_id, batch_id, edges, edge_attr,
                         num_blocks, num_graphs):
    n_atoms, hidden = H.shape
    n_edges = edges.shape[1]
    edge_size = edge_attr.shape[1]
    n_layers = params["ew1"].shape[0]
    ein = 2 * hidden + 1 + edge_size

    z_flat = Z.reshape(n_atoms, -1).astype(_F32)                  # [A, 3]
    blkid = block_id.astype(jnp.int32).reshape(1, n_atoms)
    row = edges[0].astype(jnp.int32)
    col = edges[1].astype(jnp.int32)
    row_e1 = row.reshape(n_edges, 1)
    col_e1 = col.reshape(n_edges, 1)
    row_1e = row.reshape(1, n_edges)
    batch_1b = batch_id.astype(jnp.int32).reshape(1, num_blocks)

    def const2(shape):       # whole array, resident across the layer grid
        return pl.BlockSpec(shape, lambda l: (0, 0))

    def layer3(shape2):      # [L, *shape2] stacked weights, one slice per step
        return pl.BlockSpec((None,) + shape2, lambda l: (l, 0, 0))

    grid_spec = pltpu.PrefetchScalarGridSpec(
        num_scalar_prefetch=0,
        grid=(n_layers,),
        in_specs=[
            const2((1, n_atoms)),            # block_id
            const2((n_edges, 1)),            # row (column vector)
            const2((n_edges, 1)),            # col (column vector)
            const2((1, n_edges)),            # row (row vector)
            const2((1, num_blocks)),         # batch_id
            const2((n_atoms, hidden)),       # H (atoms)
            const2((n_atoms, 3)),            # Z (atoms)
            const2((n_edges, edge_size)),    # edge_attr
            const2((hidden, hidden)),        # emb_in_w
            const2((1, hidden)),             # emb_in_b
            const2((hidden, hidden)),        # emb_out_w
            const2((1, hidden)),             # emb_out_b
            layer3((ein, hidden)),           # ew1
            layer3((1, hidden)),             # eb1
            layer3((hidden, hidden)),        # ew2
            layer3((1, hidden)),             # eb2
            layer3((hidden, hidden)),        # cw1
            layer3((1, hidden)),             # cb1
            layer3((1, hidden)),             # cw2 (row form)
            layer3((2 * hidden, hidden)),    # nw1
            layer3((1, hidden)),             # nb1
            layer3((hidden, hidden)),        # nw2
            layer3((1, hidden)),             # nb2
        ],
        out_specs=(
            pl.BlockSpec((num_blocks, hidden), lambda l: (0, 0)),
            pl.BlockSpec((num_blocks, hidden), lambda l: (0, 0)),
            pl.BlockSpec((num_graphs, hidden), lambda l: (0, 0)),
        ),
        scratch_shapes=[pltpu.VMEM((num_blocks, hidden + 3), _F32)],
    )

    H_blk, block_repr, graph_repr = pl.pallas_call(
        _egnn_fused_kernel,
        grid_spec=grid_spec,
        out_shape=(
            jax.ShapeDtypeStruct((num_blocks, hidden), _F32),
            jax.ShapeDtypeStruct((num_blocks, hidden), _F32),
            jax.ShapeDtypeStruct((num_graphs, hidden), _F32),
        ),
        compiler_params=pltpu.CompilerParams(
            dimension_semantics=("arbitrary",)),
    )(
        blkid, row_e1, col_e1, row_1e, batch_1b,
        H.astype(_F32), z_flat, edge_attr.astype(_F32),
        params["emb_in_w"], params["emb_in_b"],
        params["emb_out_w"], params["emb_out_b"],
        params["ew1"], params["eb1"], params["ew2"], params["eb2"],
        params["cw1"], params["cb1"], params["cw2r"],
        params["nw1"], params["nb1"], params["nw2"], params["nb2"],
    )
    return H_blk, block_repr, graph_repr, None


# ---------------------------------------------------------------------------
# Main
# ---------------------------------------------------------------------------

if __name__ == "__main__":
    hidden_size, edge_size, n_layers = 32, 4, 3
    n_atoms, n_blocks, n_graphs = 16, 8, 2

    key = jax.random.PRNGKey(0)
    k1, k2, k3, k4 = jax.random.split(key, 4)

    H = jax.random.normal(k1, (n_atoms, hidden_size), jnp.float32)
    Z = jax.random.normal(k2, (n_atoms, 1, 3), jnp.float32)
    block_id = jnp.repeat(jnp.arange(n_blocks, dtype=jnp.int32),
                          n_atoms // n_blocks)
    batch_id = jnp.repeat(jnp.arange(n_graphs, dtype=jnp.int32),
                          n_blocks // n_graphs)

    # fully connected block-level edges within each graph (no self loops)
    rows, cols = [], []
    bpg = n_blocks // n_graphs
    for g in range(n_graphs):
        for i in range(bpg):
            for j in range(bpg):
                if i != j:
                    rows.append(g * bpg + i)
                    cols.append(g * bpg + j)
    edges = jnp.array([rows, cols], dtype=jnp.int32)
    edge_attr = jax.random.normal(k3, (edges.shape[1], edge_size), jnp.float32)

    params = init_egnn_params(k4, hidden_size, edge_size, n_layers)

    H_out, block_repr, graph_repr, _ = egnn_encoder_forward(
        params, H, Z, block_id, batch_id, edges, edge_attr,
        n_blocks, n_graphs)

    jax.block_until_ready((H_out, block_repr, graph_repr))
    assert H_out.shape == (n_blocks, hidden_size)
    assert block_repr.shape == (n_blocks, hidden_size)
    assert graph_repr.shape == (n_graphs, hidden_size)
    assert bool(jnp.all(jnp.isfinite(H_out)))
    assert bool(jnp.all(jnp.isfinite(block_repr)))
    assert bool(jnp.all(jnp.isfinite(graph_repr)))
    print("KERNEL_OK")
</pallas_src>

<mosaic_0001>
module attributes {stable_mosaic.version = 11 : i64} {
  func.func @_egnn_fused_kernel(%arg0: i32, %arg1: memref<1x16xi32, #tpu.memory_space<vmem>>, %arg2: memref<24x1xi32, #tpu.memory_space<vmem>>, %arg3: memref<24x1xi32, #tpu.memory_space<vmem>>, %arg4: memref<1x24xi32, #tpu.memory_space<vmem>>, %arg5: memref<1x8xi32, #tpu.memory_space<vmem>>, %arg6: memref<16x32xf32, #tpu.memory_space<vmem>>, %arg7: memref<16x3xf32, #tpu.memory_space<vmem>>, %arg8: memref<24x4xf32, #tpu.memory_space<vmem>>, %arg9: memref<32x32xf32, #tpu.memory_space<vmem>>, %arg10: memref<1x32xf32, #tpu.memory_space<vmem>>, %arg11: memref<32x32xf32, #tpu.memory_space<vmem>>, %arg12: memref<1x32xf32, #tpu.memory_space<vmem>>, %arg13: memref<1x69x32xf32, #tpu.memory_space<vmem>>, %arg14: memref<1x1x32xf32, #tpu.memory_space<vmem>>, %arg15: memref<1x32x32xf32, #tpu.memory_space<vmem>>, %arg16: memref<1x1x32xf32, #tpu.memory_space<vmem>>, %arg17: memref<1x32x32xf32, #tpu.memory_space<vmem>>, %arg18: memref<1x1x32xf32, #tpu.memory_space<vmem>>, %arg19: memref<1x1x32xf32, #tpu.memory_space<vmem>>, %arg20: memref<1x64x32xf32, #tpu.memory_space<vmem>>, %arg21: memref<1x1x32xf32, #tpu.memory_space<vmem>>, %arg22: memref<1x32x32xf32, #tpu.memory_space<vmem>>, %arg23: memref<1x1x32xf32, #tpu.memory_space<vmem>>, %arg24: memref<8x32xf32, #tpu.memory_space<vmem>>, %arg25: memref<8x32xf32, #tpu.memory_space<vmem>>, %arg26: memref<2x32xf32, #tpu.memory_space<vmem>>, %arg27: memref<8x35xf32, #tpu.memory_space<vmem>>) attributes {dimension_semantics = [#tpu.dimension_semantics<arbitrary>], iteration_bounds = array<i64: 3>, scalar_prefetch = 0 : i64, scratch_operands = 1 : i64, tpu.core_type = #tpu.core_type<tc>, window_params = [{pipeline_mode = #tpu.pipeline_mode<synchronous>, transform_indices = @transform_0, window_bounds = array<i64: 1, 16>}, {pipeline_mode = #tpu.pipeline_mode<synchronous>, transform_indices = @transform_1, window_bounds = array<i64: 24, 1>}, {pipeline_mode = #tpu.pipeline_mode<synchronous>, transform_indices = @transform_2, window_bounds = array<i64: 24, 1>}, {pipeline_mode = #tpu.pipeline_mode<synchronous>, transform_indices = @transform_3, window_bounds = array<i64: 1, 24>}, {pipeline_mode = #tpu.pipeline_mode<synchronous>, transform_indices = @transform_4, window_bounds = array<i64: 1, 8>}, {pipeline_mode = #tpu.pipeline_mode<synchronous>, transform_indices = @transform_5, window_bounds = array<i64: 16, 32>}, {pipeline_mode = #tpu.pipeline_mode<synchronous>, transform_indices = @transform_6, window_bounds = array<i64: 16, 3>}, {pipeline_mode = #tpu.pipeline_mode<synchronous>, transform_indices = @transform_7, window_bounds = array<i64: 24, 4>}, {pipeline_mode = #tpu.pipeline_mode<synchronous>, transform_indices = @transform_8, window_bounds = array<i64: 32, 32>}, {pipeline_mode = #tpu.pipeline_mode<synchronous>, transform_indices = @transform_9, window_bounds = array<i64: 1, 32>}, {pipeline_mode = #tpu.pipeline_mode<synchronous>, transform_indices = @transform_10, window_bounds = array<i64: 32, 32>}, {pipeline_mode = #tpu.pipeline_mode<synchronous>, transform_indices = @transform_11, window_bounds = array<i64: 1, 32>}, {transform_indices = @transform_12, window_bounds = array<i64: 1, 69, 32>}, {transform_indices = @transform_13, window_bounds = array<i64: 1, 1, 32>}, {transform_indices = @transform_14, window_bounds = array<i64: 1, 32, 32>}, {transform_indices = @transform_15, window_bounds = array<i64: 1, 1, 32>}, {transform_indices = @transform_16, window_bounds = array<i64: 1, 32, 32>}, {transform_indices = @transform_17, window_bounds = array<i64: 1, 1, 32>}, {transform_indices = @transform_18, window_bounds = array<i64: 1, 1, 32>}, {transform_indices = @transform_19, window_bounds = array<i64: 1, 64, 32>}, {transform_indices = @transform_20, window_bounds = array<i64: 1, 1, 32>}, {transform_indices = @transform_21, window_bounds = array<i64: 1, 32, 32>}, {transform_indices = @transform_22, window_bounds = array<i64: 1, 1, 32>}, {pipeline_mode = #tpu.pipeline_mode<synchronous>, transform_indices = @transform_23, window_bounds = array<i64: 8, 32>}, {pipeline_mode = #tpu.pipeline_mode<synchronous>, transform_indices = @transform_24, window_bounds = array<i64: 8, 32>}, {pipeline_mode = #tpu.pipeline_mode<synchronous>, transform_indices = @transform_25, window_bounds = array<i64: 2, 32>}]} {
    %c0_i32 = arith.constant 0 : i32
    %0 = arith.cmpi eq, %arg0, %c0_i32 : i32
    %1 = arith.extui %0 : i1 to i32
    %c0_i32_0 = arith.constant 0 : i32
    %2 = arith.cmpi ne, %1, %c0_i32_0 : i32
    scf.if %2 {
      %122 = tpu.iota {dimensions = array<i32: 0>} : vector<8x16xi32>
      %c0_62 = arith.constant 0 : index
      %c0_63 = arith.constant 0 : index
      %123 = vector.load %arg1[%c0_62, %c0_63] : memref<1x16xi32, #tpu.memory_space<vmem>>, vector<1x16xi32>
      %124 = vector.broadcast %123 : vector<1x16xi32> to vector<8x16xi32>
      %125 = arith.cmpi eq, %122, %124 : vector<8x16xi32>
      %126 = arith.extui %125 : vector<8x16xi1> to vector<8x16xi32>
      %127 = arith.sitofp %126 : vector<8x16xi32> to vector<8x16xf32>
      %cst_64 = arith.constant dense<0.000000e+00> : vector<8xf32>
      %128 = vector.multi_reduction <add>, %127, %cst_64 [1] : vector<8x16xf32> to vector<8xf32>
      %129 = vector.shape_cast %128 : vector<8xf32> to vector<8x1xf32>
      %cst_65 = arith.constant 1.000000e+00 : f32
      %130 = vector.broadcast %cst_65 : f32 to vector<8x1xf32>
      %131 = arith.maximumf %129, %130 : vector<8x1xf32>
      %132 = vector.broadcast %131 : vector<8x1xf32> to vector<8x16xf32>
      %133 = arith.divf %127, %132 : vector<8x16xf32>
      %c0_66 = arith.constant 0 : index
      %c0_67 = arith.constant 0 : index
      %134 = vector.load %arg6[%c0_66, %c0_67] : memref<16x32xf32, #tpu.memory_space<vmem>>, vector<16x32xf32>
      %cst_68 = arith.constant dense<0.000000e+00> : vector<8x32xf32>
      %135 = tpu.matmul %133, %134, %cst_68 {dimension_numbers = #tpu.dot_dimension_numbers<[1], [0], [0], [1], [0, 0, 1, 1], [], []>} : vector<8x16xf32>, vector<16x32xf32>, vector<8x32xf32> -> vector<8x32xf32>
      %c0_69 = arith.constant 0 : index
      %c0_70 = arith.constant 0 : index
      %136 = vector.load %arg7[%c0_69, %c0_70] : memref<16x3xf32, #tpu.memory_space<vmem>>, vector<16x3xf32>
      %cst_71 = arith.constant dense<0.000000e+00> : vector<8x3xf32>
      %137 = tpu.matmul %133, %136, %cst_71 {dimension_numbers = #tpu.dot_dimension_numbers<[1], [0], [0], [1], [0, 0, 1, 1], [], []>} : vector<8x16xf32>, vector<16x3xf32>, vector<8x3xf32> -> vector<8x3xf32>
      %c0_72 = arith.constant 0 : index
      %c0_73 = arith.constant 0 : index
      %138 = vector.load %arg24[%c0_72, %c0_73] : memref<8x32xf32, #tpu.memory_space<vmem>>, vector<8x32xf32>
      tpu.vector_store %arg24[%c0_72, %c0_73], %135 {strides = array<i32>} : memref<8x32xf32, #tpu.memory_space<vmem>>, vector<8x32xf32>,
      %c0_74 = arith.constant 0 : index
      %c0_75 = arith.constant 0 : index
      %139 = vector.load %arg9[%c0_74, %c0_75] : memref<32x32xf32, #tpu.memory_space<vmem>>, vector<32x32xf32>
      %cst_76 = arith.constant dense<0.000000e+00> : vector<8x32xf32>
      %140 = tpu.matmul %135, %139, %cst_76 {dimension_numbers = #tpu.dot_dimension_numbers<[1], [0], [0], [1], [0, 0, 1, 1], [], []>} : vector<8x32xf32>, vector<32x32xf32>, vector<8x32xf32> -> vector<8x32xf32>
      %c0_77 = arith.constant 0 : index
      %c0_78 = arith.constant 0 : index
      %141 = vector.load %arg10[%c0_77, %c0_78] : memref<1x32xf32, #tpu.memory_space<vmem>>, vector<1x32xf32>
      %142 = vector.broadcast %141 : vector<1x32xf32> to vector<8x32xf32>
      %143 = arith.addf %140, %142 : vector<8x32xf32>
      %144 = tpu.concatenate %143, %137 in 1 : vector<8x32xf32>, vector<8x3xf32> -> vector<8x35xf32>
      %c0_79 = arith.constant 0 : index
      %c0_80 = arith.constant 0 : index
      %145 = vector.load %arg27[%c0_79, %c0_80] : memref<8x35xf32, #tpu.memory_space<vmem>>, vector<8x35xf32>
      tpu.vector_store %arg27[%c0_79, %c0_80], %144 {strides = array<i32>} : memref<8x35xf32, #tpu.memory_space<vmem>>, vector<8x35xf32>,
    } else {
    }
    %c0 = arith.constant 0 : index
    %c0_1 = arith.constant 0 : index
    %3 = vector.load %arg27[%c0, %c0_1] : memref<8x35xf32, #tpu.memory_space<vmem>>, vector<8x35xf32>
    %4 = vector.extract_strided_slice %3 {offsets = [0, 0], sizes = [8, 32], strides = [1, 1]} : vector<8x35xf32> to vector<8x32xf32>
    %5 = vector.extract_strided_slice %3 {offsets = [0, 32], sizes = [8, 3], strides = [1, 1]} : vector<8x35xf32> to vector<8x3xf32>
    %6 = tpu.iota {dimensions = array<i32: 1>} : vector<24x8xi32>
    %c0_2 = arith.constant 0 : index
    %c0_3 = arith.constant 0 : index
    %7 = vector.load %arg2[%c0_2, %c0_3] : memref<24x1xi32, #tpu.memory_space<vmem>>, vector<24x1xi32>
    %8 = vector.broadcast %7 : vector<24x1xi32> to vector<24x8xi32>
    %9 = arith.cmpi eq, %6, %8 : vector<24x8xi32>
    %10 = arith.extui %9 : vector<24x8xi1> to vector<24x8xi32>
    %11 = arith.sitofp %10 : vector<24x8xi32> to vector<24x8xf32>
    %c0_4 = arith.constant 0 : index
    %c0_5 = arith.constant 0 : index
    %12 = vector.load %arg3[%c0_4, %c0_5] : memref<24x1xi32, #tpu.memory_space<vmem>>, vector<24x1xi32>
    %13 = vector.broadcast %12 : vector<24x1xi32> to vector<24x8xi32>
    %14 = arith.cmpi eq, %6, %13 : vector<24x8xi32>
    %15 = arith.extui %14 : vector<24x8xi1> to vector<24x8xi32>
    %16 = arith.sitofp %15 : vector<24x8xi32> to vector<24x8xf32>
    %17 = tpu.iota {dimensions = array<i32: 0>} : vector<8x24xi32>
    %c0_6 = arith.constant 0 : index
    %c0_7 = arith.constant 0 : index
    %18 = vector.load %arg4[%c0_6, %c0_7] : memref<1x24xi32, #tpu.memory_space<vmem>>, vector<1x24xi32>
    %19 = vector.broadcast %18 : vector<1x24xi32> to vector<8x24xi32>
    %20 = arith.cmpi eq, %17, %19 : vector<8x24xi32>
    %21 = arith.extui %20 : vector<8x24xi1> to vector<8x24xi32>
    %22 = arith.sitofp %21 : vector<8x24xi32> to vector<8x24xf32>
    %cst = arith.constant dense<0.000000e+00> : vector<8xf32>
    %23 = vector.multi_reduction <add>, %22, %cst [1] : vector<8x24xf32> to vector<8xf32>
    %24 = vector.shape_cast %23 : vector<8xf32> to vector<8x1xf32>
    %cst_8 = arith.constant 1.000000e+00 : f32
    %25 = vector.broadcast %cst_8 : f32 to vector<8x1xf32>
    %26 = arith.maximumf %24, %25 : vector<8x1xf32>
    %cst_9 = arith.constant 1.000000e+00 : f32
    %27 = vector.broadcast %cst_9 : f32 to vector<8x1xf32>
    %28 = arith.divf %27, %26 : vector<8x1xf32>
    %cst_10 = arith.constant dense<0.000000e+00> : vector<24x35xf32>
    %29 = tpu.matmul %11, %3, %cst_10 {dimension_numbers = #tpu.dot_dimension_numbers<[1], [0], [0], [1], [0, 0, 1, 1], [], []>} : vector<24x8xf32>, vector<8x35xf32>, vector<24x35xf32> -> vector<24x35xf32>
    %cst_11 = arith.constant dense<0.000000e+00> : vector<24x35xf32>
    %30 = tpu.matmul %16, %3, %cst_11 {dimension_numbers = #tpu.dot_dimension_numbers<[1], [0], [0], [1], [0, 0, 1, 1], [], []>} : vector<24x8xf32>, vector<8x35xf32>, vector<24x35xf32> -> vector<24x35xf32>
    %31 = vector.extract_strided_slice %29 {offsets = [0, 0], sizes = [24, 32], strides = [1, 1]} : vector<24x35xf32> to vector<24x32xf32>
    %32 = vector.extract_strided_slice %29 {offsets = [0, 32], sizes = [24, 3], strides = [1, 1]} : vector<24x35xf32> to vector<24x3xf32>
    %33 = vector.extract_strided_slice %30 {offsets = [0, 0], sizes = [24, 32], strides = [1, 1]} : vector<24x35xf32> to vector<24x32xf32>
    %34 = vector.extract_strided_slice %30 {offsets = [0, 32], sizes = [24, 3], strides = [1, 1]} : vector<24x35xf32> to vector<24x3xf32>
    %35 = arith.subf %32, %34 : vector<24x3xf32>
    %36 = arith.mulf %35, %35 : vector<24x3xf32>
    %cst_12 = arith.constant dense<0.000000e+00> : vector<24xf32>
    %37 = vector.multi_reduction <add>, %36, %cst_12 [1] : vector<24x3xf32> to vector<24xf32>
    %38 = vector.shape_cast %37 : vector<24xf32> to vector<24x1xf32>
    %c0_13 = arith.constant 0 : index
    %c0_14 = arith.constant 0 : index
    %39 = vector.load %arg8[%c0_13, %c0_14] : memref<24x4xf32, #tpu.memory_space<vmem>>, vector<24x4xf32>
    %40 = tpu.concatenate %31, %33, %38, %39 in 1 : vector<24x32xf32>, vector<24x32xf32>, vector<24x1xf32>, vector<24x4xf32> -> vector<24x69xf32>
    %c0_15 = arith.constant 0 : index
    %c0_16 = arith.constant 0 : index
    %c0_17 = arith.constant 0 : index
    %41 = vector.load %arg13[%c0_15, %c0_16, %c0_17] : memref<1x69x32xf32, #tpu.memory_space<vmem>>, vector<1x69x32xf32>
    %42 = vector.shape_cast %41 : vector<1x69x32xf32> to vector<69x32xf32>
    %cst_18 = arith.constant dense<0.000000e+00> : vector<24x32xf32>
    %43 = tpu.matmul %40, %42, %cst_18 {dimension_numbers = #tpu.dot_dimension_numbers<[1], [0], [0], [1], [0, 0, 1, 1], [], []>} : vector<24x69xf32>, vector<69x32xf32>, vector<24x32xf32> -> vector<24x32xf32>
    %c0_19 = arith.constant 0 : index
    %c0_20 = arith.constant 0 : index
    %c0_21 = arith.constant 0 : index
    %44 = vector.load %arg14[%c0_19, %c0_20, %c0_21] : memref<1x1x32xf32, #tpu.memory_space<vmem>>, vector<1x1x32xf32>
    %45 = vector.shape_cast %44 : vector<1x1x32xf32> to vector<1x32xf32>
    %46 = vector.broadcast %45 : vector<1x32xf32> to vector<24x32xf32>
    %47 = arith.addf %43, %46 : vector<24x32xf32>
    %48 = arith.negf %47 : vector<24x32xf32>
    %49 = math.exp %48 : vector<24x32xf32>
    %cst_22 = arith.constant 1.000000e+00 : f32
    %50 = vector.broadcast %cst_22 : f32 to vector<24x32xf32>
    %51 = arith.addf %50, %49 : vector<24x32xf32>
    %52 = arith.divf %50, %51 : vector<24x32xf32>
    %53 = arith.mulf %47, %52 : vector<24x32xf32>
    %c0_23 = arith.constant 0 : index
    %c0_24 = arith.constant 0 : index
    %c0_25 = arith.constant 0 : index
    %54 = vector.load %arg15[%c0_23, %c0_24, %c0_25] : memref<1x32x32xf32, #tpu.memory_space<vmem>>, vector<1x32x32xf32>
    %55 = vector.shape_cast %54 : vector<1x32x32xf32> to vector<32x32xf32>
    %cst_26 = arith.constant dense<0.000000e+00> : vector<24x32xf32>
    %56 = tpu.matmul %53, %55, %cst_26 {dimension_numbers = #tpu.dot_dimension_numbers<[1], [0], [0], [1], [0, 0, 1, 1], [], []>} : vector<24x32xf32>, vector<32x32xf32>, vector<24x32xf32> -> vector<24x32xf32>
    %c0_27 = arith.constant 0 : index
    %c0_28 = arith.constant 0 : index
    %c0_29 = arith.constant 0 : index
    %57 = vector.load %arg16[%c0_27, %c0_28, %c0_29] : memref<1x1x32xf32, #tpu.memory_space<vmem>>, vector<1x1x32xf32>
    %58 = vector.shape_cast %57 : vector<1x1x32xf32> to vector<1x32xf32>
    %59 = vector.broadcast %58 : vector<1x32xf32> to vector<24x32xf32>
    %60 = arith.addf %56, %59 : vector<24x32xf32>
    %61 = arith.negf %60 : vector<24x32xf32>
    %62 = math.exp %61 : vector<24x32xf32>
    %cst_30 = arith.constant 1.000000e+00 : f32
    %63 = vector.broadcast %cst_30 : f32 to vector<24x32xf32>
    %64 = arith.addf %63, %62 : vector<24x32xf32>
    %65 = arith.divf %63, %64 : vector<24x32xf32>
    %66 = arith.mulf %60, %65 : vector<24x32xf32>
    %c0_31 = arith.constant 0 : index
    %c0_32 = arith.constant 0 : index
    %c0_33 = arith.constant 0 : index
    %67 = vector.load %arg17[%c0_31, %c0_32, %c0_33] : memref<1x32x32xf32, #tpu.memory_space<vmem>>, vector<1x32x32xf32>
    %68 = vector.shape_cast %67 : vector<1x32x32xf32> to vector<32x32xf32>
    %cst_34 = arith.constant dense<0.000000e+00> : vector<24x32xf32>
    %69 = tpu.matmul %66, %68, %cst_34 {dimension_numbers = #tpu.dot_dimension_numbers<[1], [0], [0], [1], [0, 0, 1, 1], [], []>} : vector<24x32xf32>, vector<32x32xf32>, vector<24x32xf32> -> vector<24x32xf32>
    %c0_35 = arith.constant 0 : index
    %c0_36 = arith.constant 0 : index
    %c0_37 = arith.constant 0 : index
    %70 = vector.load %arg18[%c0_35, %c0_36, %c0_37] : memref<1x1x32xf32, #tpu.memory_space<vmem>>, vector<1x1x32xf32>
    %71 = vector.shape_cast %70 : vector<1x1x32xf32> to vector<1x32xf32>
    %72 = vector.broadcast %71 : vector<1x32xf32> to vector<24x32xf32>
    %73 = arith.addf %69, %72 : vector<24x32xf32>
    %74 = arith.negf %73 : vector<24x32xf32>
    %75 = math.exp %74 : vector<24x32xf32>
    %cst_38 = arith.constant 1.000000e+00 : f32
    %76 = vector.broadcast %cst_38 : f32 to vector<24x32xf32>
    %77 = arith.addf %76, %75 : vector<24x32xf32>
    %78 = arith.divf %76, %77 : vector<24x32xf32>
    %79 = arith.mulf %73, %78 : vector<24x32xf32>
    %c0_39 = arith.constant 0 : index
    %c0_40 = arith.constant 0 : index
    %c0_41 = arith.constant 0 : index
    %80 = vector.load %arg19[%c0_39, %c0_40, %c0_41] : memref<1x1x32xf32, #tpu.memory_space<vmem>>, vector<1x1x32xf32>
    %81 = vector.shape_cast %80 : vector<1x1x32xf32> to vector<1x32xf32>
    %82 = vector.broadcast %81 : vector<1x32xf32> to vector<24x32xf32>
    %83 = arith.mulf %79, %82 : vector<24x32xf32>
    %cst_42 = arith.constant dense<0.000000e+00> : vector<24xf32>
    %84 = vector.multi_reduction <add>, %83, %cst_42 [1] : vector<24x32xf32> to vector<24xf32>
    %85 = vector.shape_cast %84 : vector<24xf32> to vector<24x1xf32>
    %86 = vector.broadcast %85 : vector<24x1xf32> to vector<24x3xf32>
    %87 = arith.mulf %35, %86 : vector<24x3xf32>
    %88 = tpu.concatenate %66, %87 in 1 : vector<24x32xf32>, vector<24x3xf32> -> vector<24x35xf32>
    %cst_43 = arith.constant dense<0.000000e+00> : vector<8x35xf32>
    %89 = tpu.matmul %22, %88, %cst_43 {dimension_numbers = #tpu.dot_dimension_numbers<[1], [0], [0], [1], [0, 0, 1, 1], [], []>} : vector<8x24xf32>, vector<24x35xf32>, vector<8x35xf32> -> vector<8x35xf32>
    %90 = vector.extract_strided_slice %89 {offsets = [0, 0], sizes = [8, 32], strides = [1, 1]} : vector<8x35xf32> to vector<8x32xf32>
    %91 = vector.extract_strided_slice %89 {offsets = [0, 32], sizes = [8, 3], strides = [1, 1]} : vector<8x35xf32> to vector<8x3xf32>
    %92 = vector.broadcast %28 : vector<8x1xf32> to vector<8x3xf32>
    %93 = arith.mulf %91, %92 : vector<8x3xf32>
    %94 = arith.addf %5, %93 : vector<8x3xf32>
    %95 = tpu.concatenate %4, %90 in 1 : vector<8x32xf32>, vector<8x32xf32> -> vector<8x64xf32>
    %c0_44 = arith.constant 0 : index
    %c0_45 = arith.constant 0 : index
    %c0_46 = arith.constant 0 : index
    %96 = vector.load %arg20[%c0_44, %c0_45, %c0_46] : memref<1x64x32xf32, #tpu.memory_space<vmem>>, vector<1x64x32xf32>
    %97 = vector.shape_cast %96 : vector<1x64x32xf32> to vector<64x32xf32>
    %cst_47 = arith.constant dense<0.000000e+00> : vector<8x32xf32>
    %98 = tpu.matmul %95, %97, %cst_47 {dimension_numbers = #tpu.dot_dimension_numbers<[1], [0], [0], [1], [0, 0, 1, 1], [], []>} : vector<8x64xf32>, vector<64x32xf32>, vector<8x32xf32> -> vector<8x32xf32>
    %c0_48 = arith.constant 0 : index
    %c0_49 = arith.constant 0 : index
    %c0_50 = arith.constant 0 : index
    %99 = vector.load %arg21[%c0_48, %c0_49, %c0_50] : memref<1x1x32xf32, #tpu.memory_space<vmem>>, vector<1x1x32xf32>
    %100 = vector.shape_cast %99 : vector<1x1x32xf32> to vector<1x32xf32>
    %101 = vector.broadcast %100 : vector<1x32xf32> to vector<8x32xf32>
    %102 = arith.addf %98, %101 : vector<8x32xf32>
    %103 = arith.negf %102 : vector<8x32xf32>
    %104 = math.exp %103 : vector<8x32xf32>
    %cst_51 = arith.constant 1.000000e+00 : f32
    %105 = vector.broadcast %cst_51 : f32 to vector<8x32xf32>
    %106 = arith.addf %105, %104 : vector<8x32xf32>
    %107 = arith.divf %105, %106 : vector<8x32xf32>
    %108 = arith.mulf %102, %107 : vector<8x32xf32>
    %c0_52 = arith.constant 0 : index
    %c0_53 = arith.constant 0 : index
    %c0_54 = arith.constant 0 : index
    %109 = vector.load %arg22[%c0_52, %c0_53, %c0_54] : memref<1x32x32xf32, #tpu.memory_space<vmem>>, vector<1x32x32xf32>
    %110 = vector.shape_cast %109 : vector<1x32x32xf32> to vector<32x32xf32>
    %cst_55 = arith.constant dense<0.000000e+00> : vector<8x32xf32>
    %111 = tpu.matmul %108, %110, %cst_55 {dimension_numbers = #tpu.dot_dimension_numbers<[1], [0], [0], [1], [0, 0, 1, 1], [], []>} : vector<8x32xf32>, vector<32x32xf32>, vector<8x32xf32> -> vector<8x32xf32>
    %c0_56 = arith.constant 0 : index
    %c0_57 = arith.constant 0 : index
    %c0_58 = arith.constant 0 : index
    %112 = vector.load %arg23[%c0_56, %c0_57, %c0_58] : memref<1x1x32xf32, #tpu.memory_space<vmem>>, vector<1x1x32xf32>
    %113 = vector.shape_cast %112 : vector<1x1x32xf32> to vector<1x32xf32>
    %114 = vector.broadcast %113 : vector<1x32xf32> to vector<8x32xf32>
    %115 = arith.addf %111, %114 : vector<8x32xf32>
    %116 = arith.addf %4, %115 : vector<8x32xf32>
    %117 = tpu.concatenate %116, %94 in 1 : vector<8x32xf32>, vector<8x3xf32> -> vector<8x35xf32>
    %c0_59 = arith.constant 0 : index
    %c0_60 = arith.constant 0 : index
    %118 = vector.load %arg27[%c0_59, %c0_60] : memref<8x35xf32, #tpu.memory_space<vmem>>, vector<8x35xf32>
    tpu.vector_store %arg27[%c0_59, %c0_60], %117 {strides = array<i32>} : memref<8x35xf32, #tpu.memory_space<vmem>>, vector<8x35xf32>,
    %c2_i32 = arith.constant 2 : i32
    %119 = arith.cmpi eq, %arg0, %c2_i32 : i32
    %120 = arith.extui %119 : i1 to i32
    %c0_i32_61 = arith.constant 0 : i32
    %121 = arith.cmpi ne, %120, %c0_i32_61 : i32
    scf.if %121 {
      %c0_62 = arith.constant 0 : index
      %c0_63 = arith.constant 0 : index
      %122 = vector.load %arg11[%c0_62, %c0_63] : memref<32x32xf32, #tpu.memory_space<vmem>>, vector<32x32xf32>
      %cst_64 = arith.constant dense<0.000000e+00> : vector<8x32xf32>
      %123 = tpu.matmul %116, %122, %cst_64 {dimension_numbers = #tpu.dot_dimension_numbers<[1], [0], [0], [1], [0, 0, 1, 1], [], []>} : vector<8x32xf32>, vector<32x32xf32>, vector<8x32xf32> -> vector<8x32xf32>
      %c0_65 = arith.constant 0 : index
      %c0_66 = arith.constant 0 : index
      %124 = vector.load %arg12[%c0_65, %c0_66] : memref<1x32xf32, #tpu.memory_space<vmem>>, vector<1x32xf32>
      %125 = vector.broadcast %124 : vector<1x32xf32> to vector<8x32xf32>
      %126 = arith.addf %123, %125 : vector<8x32xf32>
      %127 = arith.mulf %126, %126 : vector<8x32xf32>
      %cst_67 = arith.constant dense<0.000000e+00> : vector<8xf32>
      %128 = vector.multi_reduction <add>, %127, %cst_67 [1] : vector<8x32xf32> to vector<8xf32>
      %129 = vector.shape_cast %128 : vector<8xf32> to vector<8x1xf32>
      %cst_68 = arith.constant 1.000000e-24 : f32
      %130 = vector.broadcast %cst_68 : f32 to vector<8x1xf32>
      %131 = arith.maximumf %129, %130 : vector<8x1xf32>
      %132 = math.rsqrt %131 : vector<8x1xf32>
      %133 = vector.broadcast %132 : vector<8x1xf32> to vector<8x32xf32>
      %134 = arith.mulf %126, %133 : vector<8x32xf32>
      %c0_69 = arith.constant 0 : index
      %c0_70 = arith.constant 0 : index
      %135 = vector.load %arg25[%c0_69, %c0_70] : memref<8x32xf32, #tpu.memory_space<vmem>>, vector<8x32xf32>
      tpu.vector_store %arg25[%c0_69, %c0_70], %134 {strides = array<i32>} : memref<8x32xf32, #tpu.memory_space<vmem>>, vector<8x32xf32>,
      %136 = tpu.iota {dimensions = array<i32: 0>} : vector<2x8xi32>
      %c0_71 = arith.constant 0 : index
      %c0_72 = arith.constant 0 : index
      %137 = vector.load %arg5[%c0_71, %c0_72] : memref<1x8xi32, #tpu.memory_space<vmem>>, vector<1x8xi32>
      %138 = vector.broadcast %137 : vector<1x8xi32> to vector<2x8xi32>
      %139 = arith.cmpi eq, %136, %138 : vector<2x8xi32>
      %140 = arith.extui %139 : vector<2x8xi1> to vector<2x8xi32>
      %141 = arith.sitofp %140 : vector<2x8xi32> to vector<2x8xf32>
      %cst_73 = arith.constant dense<0.000000e+00> : vector<2x32xf32>
      %142 = tpu.matmul %141, %134, %cst_73 {dimension_numbers = #tpu.dot_dimension_numbers<[1], [0], [0], [1], [0, 0, 1, 1], [], []>} : vector<2x8xf32>, vector<8x32xf32>, vector<2x32xf32> -> vector<2x32xf32>
      %143 = arith.mulf %142, %142 : vector<2x32xf32>
      %cst_74 = arith.constant dense<0.000000e+00> : vector<2xf32>
      %144 = vector.multi_reduction <add>, %143, %cst_74 [1] : vector<2x32xf32> to vector<2xf32>
      %145 = vector.shape_cast %144 : vector<2xf32> to vector<2x1xf32>
      %cst_75 = arith.constant 1.000000e-24 : f32
      %146 = vector.broadcast %cst_75 : f32 to vector<2x1xf32>
      %147 = arith.maximumf %145, %146 : vector<2x1xf32>
      %148 = math.rsqrt %147 : vector<2x1xf32>
      %149 = vector.broadcast %148 : vector<2x1xf32> to vector<2x32xf32>
      %150 = arith.mulf %142, %149 : vector<2x32xf32>
      %c0_76 = arith.constant 0 : index
      %c0_77 = arith.constant 0 : index
      %151 = vector.load %arg26[%c0_76, %c0_77] : memref<2x32xf32, #tpu.memory_space<vmem>>, vector<2x32xf32>
      tpu.vector_store %arg26[%c0_76, %c0_77], %150 {strides = array<i32>} : memref<2x32xf32, #tpu.memory_space<vmem>>, vector<2x32xf32>,
    } else {
    }
    return
  }
  func.func @transform_0(%arg0: i32) -> (i32, i32) {
    %c0_i32 = arith.constant 0 : i32
    %c0_i32_0 = arith.constant 0 : i32
    %c0_i32_1 = arith.constant 0 : i32
    return %c0_i32, %c0_i32_0 : i32, i32
  }
  func.func @transform_1(%arg0: i32) -> (i32, i32) {
    %c0_i32 = arith.constant 0 : i32
    %c0_i32_0 = arith.constant 0 : i32
    %c0_i32_1 = arith.constant 0 : i32
    return %c0_i32, %c0_i32_0 : i32, i32
  }
  func.func @transform_2(%arg0: i32) -> (i32, i32) {
    %c0_i32 = arith.constant 0 : i32
    %c0_i32_0 = arith.constant 0 : i32
    %c0_i32_1 = arith.constant 0 : i32
    return %c0_i32, %c0_i32_0 : i32, i32
  }
  func.func @transform_3(%arg0: i32) -> (i32, i32) {
    %c0_i32 = arith.constant 0 : i32
    %c0_i32_0 = arith.constant 0 : i32
    %c0_i32_1 = arith.constant 0 : i32
    return %c0_i32, %c0_i32_0 : i32, i32
  }
  func.func @transform_4(%arg0: i32) -> (i32, i32) {
    %c0_i32 = arith.constant 0 : i32
    %c0_i32_0 = arith.constant 0 : i32
    %c0_i32_1 = arith.constant 0 : i32
    return %c0_i32, %c0_i32_0 : i32, i32
  }
  func.func @transform_5(%arg0: i32) -> (i32, i32) {
    %c0_i32 = arith.constant 0 : i32
    %c0_i32_0 = arith.constant 0 : i32
    %c0_i32_1 = arith.constant 0 : i32
    return %c0_i32, %c0_i32_0 : i32, i32
  }
  func.func @transform_6(%arg0: i32) -> (i32, i32) {
    %c0_i32 = arith.constant 0 : i32
    %c0_i32_0 = arith.constant 0 : i32
    %c0_i32_1 = arith.constant 0 : i32
    return %c0_i32, %c0_i32_0 : i32, i32
  }
  func.func @transform_7(%arg0: i32) -> (i32, i32) {
    %c0_i32 = arith.constant 0 : i32
    %c0_i32_0 = arith.constant 0 : i32
    %c0_i32_1 = arith.constant 0 : i32
    return %c0_i32, %c0_i32_0 : i32, i32
  }
  func.func @transform_8(%arg0: i32) -> (i32, i32) {
    %c0_i32 = arith.constant 0 : i32
    %c0_i32_0 = arith.constant 0 : i32
    %c0_i32_1 = arith.constant 0 : i32
    return %c0_i32, %c0_i32_0 : i32, i32
  }
  func.func @transform_9(%arg0: i32) -> (i32, i32) {
    %c0_i32 = arith.constant 0 : i32
    %c0_i32_0 = arith.constant 0 : i32
    %c0_i32_1 = arith.constant 0 : i32
    return %c0_i32, %c0_i32_0 : i32, i32
  }
  func.func @transform_10(%arg0: i32) -> (i32, i32) {
    %c0_i32 = arith.constant 0 : i32
    %c0_i32_0 = arith.constant 0 : i32
    %c0_i32_1 = arith.constant 0 : i32
    return %c0_i32, %c0_i32_0 : i32, i32
  }
  func.func @transform_11(%arg0: i32) -> (i32, i32) {
    %c0_i32 = arith.constant 0 : i32
    %c0_i32_0 = arith.constant 0 : i32
    %c0_i32_1 = arith.constant 0 : i32
    return %c0_i32, %c0_i32_0 : i32, i32
  }
  func.func @transform_12(%arg0: i32) -> (i32, i32, i32) {
    %c0_i32 = arith.constant 0 : i32
    %c0_i32_0 = arith.constant 0 : i32
    %c0_i32_1 = arith.constant 0 : i32
    return %arg0, %c0_i32, %c0_i32_0 : i32, i32, i32
  }
  func.func @transform_13(%arg0: i32) -> (i32, i32, i32) {
    %c0_i32 = arith.constant 0 : i32
    %c0_i32_0 = arith.constant 0 : i32
    %c0_i32_1 = arith.constant 0 : i32
    return %arg0, %c0_i32, %c0_i32_0 : i32, i32, i32
  }
  func.func @transform_14(%arg0: i32) -> (i32, i32, i32) {
    %c0_i32 = arith.constant 0 : i32
    %c0_i32_0 = arith.constant 0 : i32
    %c0_i32_1 = arith.constant 0 : i32
    return %arg0, %c0_i32, %c0_i32_0 : i32, i32, i32
  }
  func.func @transform_15(%arg0: i32) -> (i32, i32, i32) {
    %c0_i32 = arith.constant 0 : i32
    %c0_i32_0 = arith.constant 0 : i32
    %c0_i32_1 = arith.constant 0 : i32
    return %arg0, %c0_i32, %c0_i32_0 : i32, i32, i32
  }
  func.func @transform_16(%arg0: i32) -> (i32, i32, i32) {
    %c0_i32 = arith.constant 0 : i32
    %c0_i32_0 = arith.constant 0 : i32
    %c0_i32_1 = arith.constant 0 : i32
    return %arg0, %c0_i32, %c0_i32_0 : i32, i32, i32
  }
  func.func @transform_17(%arg0: i32) -> (i32, i32, i32) {
    %c0_i32 = arith.constant 0 : i32
    %c0_i32_0 = arith.constant 0 : i32
    %c0_i32_1 = arith.constant 0 : i32
    return %arg0, %c0_i32, %c0_i32_0 : i32, i32, i32
  }
  func.func @transform_18(%arg0: i32) -> (i32, i32, i32) {
    %c0_i32 = arith.constant 0 : i32
    %c0_i32_0 = arith.constant 0 : i32
    %c0_i32_1 = arith.constant 0 : i32
    return %arg0, %c0_i32, %c0_i32_0 : i32, i32, i32
  }
  func.func @transform_19(%arg0: i32) -> (i32, i32, i32) {
    %c0_i32 = arith.constant 0 : i32
    %c0_i32_0 = arith.constant 0 : i32
    %c0_i32_1 = arith.constant 0 : i32
    return %arg0, %c0_i32, %c0_i32_0 : i32, i32, i32
  }
  func.func @transform_20(%arg0: i32) -> (i32, i32, i32) {
    %c0_i32 = arith.constant 0 : i32
    %c0_i32_0 = arith.constant 0 : i32
    %c0_i32_1 = arith.constant 0 : i32
    return %arg0, %c0_i32, %c0_i32_0 : i32, i32, i32
  }
  func.func @transform_21(%arg0: i32) -> (i32, i32, i32) {
    %c0_i32 = arith.constant 0 : i32
    %c0_i32_0 = arith.constant 0 : i32
    %c0_i32_1 = arith.constant 0 : i32
    return %arg0, %c0_i32, %c0_i32_0 : i32, i32, i32
  }
  func.func @transform_22(%arg0: i32) -> (i32, i32, i32) {
    %c0_i32 = arith.constant 0 : i32
    %c0_i32_0 = arith.constant 0 : i32
    %c0_i32_1 = arith.constant 0 : i32
    return %arg0, %c0_i32, %c0_i32_0 : i32, i32, i32
  }
  func.func @transform_23(%arg0: i32) -> (i32, i32) {
    %c0_i32 = arith.constant 0 : i32
    %c0_i32_0 = arith.constant 0 : i32
    %c0_i32_1 = arith.constant 0 : i32
    return %c0_i32, %c0_i32_0 : i32, i32
  }
  func.func @transform_24(%arg0: i32) -> (i32, i32) {
    %c0_i32 = arith.constant 0 : i32
    %c0_i32_0 = arith.constant 0 : i32
    %c0_i32_1 = arith.constant 0 : i32
    return %c0_i32, %c0_i32_0 : i32, i32
  }
  func.func @transform_25(%arg0: i32) -> (i32, i32) {
    %c0_i32 = arith.constant 0 : i32
    %c0_i32_0 = arith.constant 0 : i32
    %c0_i32_1 = arith.constant 0 : i32
    return %c0_i32, %c0_i32_0 : i32, i32
  }
}

</mosaic_0001>

<llo_original>
// kernel: egnn_encoder_forward.1
$region0: #{egnn_encoder_forward.1}
  #allocation0 [shape = 'u32[]', space=smem, size = 0x4, offset = 0x4, fixed_abs, tag = 'smem constant byte address 0x4 - core index']
  #allocation1 [shape = 'u32[72,128]{1,0:T(1,128)}', space=vmem, size = 0x9000, scoped, tag = 'internal scratch']
  #allocation2 [shape = 'f32[8,35]{1,0:T(8,128)}', space=vmem, size = 0x1000, scoped, tag = 'scratch operand']
  %s0 = inlined_call_operand.vmem [shape: s32[1,16], index: 0, kind: input, shape index: {}]
  %s1 = inlined_call_operand.vmem [shape: s32[24,1], index: 1, kind: input, shape index: {}]
  %s2 = inlined_call_operand.vmem [shape: s32[24,1], index: 2, kind: input, shape index: {}]
  %s3 = inlined_call_operand.vmem [shape: s32[1,24], index: 3, kind: input, shape index: {}]
  %s4 = inlined_call_operand.vmem [shape: s32[1,8], index: 4, kind: input, shape index: {}]
  %s5 = inlined_call_operand.vmem [shape: f32[16,32], index: 5, kind: input, shape index: {}]
  %s6 = inlined_call_operand.vmem [shape: f32[16,3], index: 6, kind: input, shape index: {}]
  %s7 = inlined_call_operand.vmem [shape: f32[24,4], index: 7, kind: input, shape index: {}]
  %s8 = inlined_call_operand.vmem [shape: f32[32,32], index: 8, kind: input, shape index: {}]
  %s9 = inlined_call_operand.vmem [shape: f32[1,32], index: 9, kind: input, shape index: {}]
  %s10 = inlined_call_operand.vmem [shape: f32[32,32], index: 10, kind: input, shape index: {}]
  %s11 = inlined_call_operand.vmem [shape: f32[1,32], index: 11, kind: input, shape index: {}]
  %s12 = inlined_call_operand.vmem [shape: f32[3,69,32], index: 12, kind: input, shape index: {}]
  %s13 = inlined_call_operand.vmem [shape: f32[3,1,32], index: 13, kind: input, shape index: {}]
  %s14 = inlined_call_operand.vmem [shape: f32[3,32,32], index: 14, kind: input, shape index: {}]
  %s15 = inlined_call_operand.vmem [shape: f32[3,1,32], index: 15, kind: input, shape index: {}]
  %s16 = inlined_call_operand.vmem [shape: f32[3,32,32], index: 16, kind: input, shape index: {}]
  %s17 = inlined_call_operand.vmem [shape: f32[3,1,32], index: 17, kind: input, shape index: {}]
  %s18 = inlined_call_operand.vmem [shape: f32[3,1,32], index: 18, kind: input, shape index: {}]
  %s19 = inlined_call_operand.vmem [shape: f32[3,64,32], index: 19, kind: input, shape index: {}]
  %s20 = inlined_call_operand.vmem [shape: f32[3,1,32], index: 20, kind: input, shape index: {}]
  %s21 = inlined_call_operand.vmem [shape: f32[3,32,32], index: 21, kind: input, shape index: {}]
  %s22 = inlined_call_operand.vmem [shape: f32[3,1,32], index: 22, kind: input, shape index: {}]
  %s23 = inlined_call_operand.hbm [shape: f32[8,32], index: 23, kind: output, shape index: {0}]
  %s24 = inlined_call_operand.hbm [shape: f32[8,32], index: 24, kind: output, shape index: {1}]
  %s25 = inlined_call_operand.hbm [shape: f32[2,32], index: 25, kind: output, shape index: {2}]
  %26 = xla_tuple %s23, %s24, %s25
  %s27 = sld [smem:[#allocation0]]
  $region149: #{egnn_encoder_forward.1} parent=0
    _
  %s29 = ssub.s32 1, %s27
  %s30 = scalar_select 0, %s29, %s27
  $region1: #{egnn_encoder_forward.1} parent=0
    #allocation3 [shape = 'u8[4096]{0}', space=vmem, size = 0x1000, scoped, tag = 'output window, operand 0, single buffered']
    #allocation4 [shape = 's32[2]{0}', space=sflag, size = 0x8, scoped, tag = 'scoped memory for egnn_encoder_forward.1']
    #allocation5 [shape = 'u8[4096]{0}', space=vmem, size = 0x1000, scoped, tag = 'output window, operand 1, single buffered']
    #allocation6 [shape = 's32[1]{0}', space=sflag, size = 0x4, scoped, tag = 'scoped memory for egnn_encoder_forward.1']
    #allocation7 [shape = 'u8[1024]{0}', space=vmem, size = 0x400, scoped, tag = 'output window, operand 2, single buffered']
    %31 = vsyncpa [#allocation4], 0
    %32 = vsyncpa [#allocation6], 0
    loop: start=0, step=1, limit=5
    $region2: #{egnn_encoder_forward.1} parent=1 // loop_pre_header
      _
    $region3: #{egnn_encoder_forward.1} parent=1 // loop_header
      %s34 = sphi 0, %s38
      %p35 = scmp.ge.s32.totalorder %s34, 5
      %s42 = sphi 0, %s42
      %s44 = sphi 0, %s42
      %s45 = sphi 0, %s44
      %s59 = sphi 0, %s45
      %s63 = sphi 0, %s63
      %s65 = sphi 0, %s63
      %s66 = sphi 0, %s65
      %s80 = sphi 0, %s66
      %s84 = sphi 0, %s84
      %s86 = sphi 0, %s84
      %s87 = sphi 0, %s86
      %s101 = sphi 0, %s87
      %s105 = sphi 0, %s105
      %s107 = sphi 0, %s105
      %s108 = sphi 0, %s107
      %s122 = sphi 0, %s108
      %s126 = sphi 0, %s126
      %s128 = sphi 0, %s126
      %s129 = sphi 0, %s128
      %s143 = sphi 0, %s129
      %s147 = sphi 0, %s147
      %s149 = sphi 0, %s147
      %s150 = sphi 0, %s149
      %s164 = sphi 0, %s150
      %s168 = sphi 0, %s168
      %s170 = sphi 0, %s168
      %s171 = sphi 0, %s170
      %s185 = sphi 0, %s171
      %s189 = sphi 0, %s189
      %s191 = sphi 0, %s189
      %s192 = sphi 0, %s191
      %s206 = sphi 0, %s192
      %s210 = sphi 0, %s210
      %s212 = sphi 0, %s210
      %s213 = sphi 0, %s212
      %s227 = sphi 0, %s213
      %s231 = sphi 0, %s231
      %s233 = sphi 0, %s231
      %s234 = sphi 0, %s233
      %s248 = sphi 0, %s234
      %s252 = sphi 0, %s252
      %s254 = sphi 0, %s252
      %s255 = sphi 0, %s254
      %s269 = sphi 0, %s255
      %s273 = sphi 0, %s273
      %s275 = sphi 0, %s273
      %s276 = sphi 0, %s275
      %s290 = sphi 0, %s276
      %s296 = sphi 0, %s298
      %s299 = sphi 0, %s296
      %s300 = sphi 0, %s299
      %s316 = sphi 0, %s300
      %s322 = sphi 0, %s324
      %s325 = sphi 0, %s322
      %s326 = sphi 0, %s325
      %s342 = sphi 0, %s326
      %s348 = sphi 0, %s350
      %s351 = sphi 0, %s348
      %s352 = sphi 0, %s351
      %s368 = sphi 0, %s352
      %s374 = sphi 0, %s376
      %s377 = sphi 0, %s374
      %s378 = sphi 0, %s377
      %s394 = sphi 0, %s378
      %s400 = sphi 0, %s402
      %s403 = sphi 0, %s400
      %s404 = sphi 0, %s403
      %s420 = sphi 0, %s404
      %s426 = sphi 0, %s428
      %s429 = sphi 0, %s426
      %s430 = sphi 0, %s429
      %s446 = sphi 0, %s430
      %s452 = sphi 0, %s454
      %s455 = sphi 0, %s452
      %s456 = sphi 0, %s455
      %s472 = sphi 0, %s456
      %s478 = sphi 0, %s480
      %s481 = sphi 0, %s478
      %s482 = sphi 0, %s481
      %s498 = sphi 0, %s482
      %s504 = sphi 0, %s506
      %s507 = sphi 0, %s504
      %s508 = sphi 0, %s507
      %s524 = sphi 0, %s508
      %s530 = sphi 0, %s532
      %s533 = sphi 0, %s530
      %s534 = sphi 0, %s533
      %s550 = sphi 0, %s534
      %s556 = sphi 0, %s558
      %s559 = sphi 0, %s556
      %s560 = sphi 0, %s559
      %s576 = sphi 0, %s560
      %s580 = sphi 0, %s580
      %s582 = sphi 0, %s580
      %s583 = sphi 0, %s582
      %s597 = sphi 0, %s583
      %s601 = sphi 0, %s601
      %s603 = sphi 0, %s601
      %s604 = sphi 0, %s603
      %s618 = sphi 0, %s604
      %s622 = sphi 0, %s622
      %s624 = sphi 0, %s622
      %s625 = sphi 0, %s624
      %s639 = sphi 0, %s625
    $region4: #{egnn_encoder_forward.1} parent=1 // loop_header_branch
      %37 = sbr.rel (%p35) target = $region8
    $region5: #{egnn_encoder_forward.1} parent=1 // loop_body
      %s39 = ssub.s32 %s34, 1
      %s40 = ssub.s32 %s34, 2
      %s41 = sadd.s32 %s34, 1
      %s43 = sadd.s32 %s42, 1
      %p46 = scmp.eq.s32.totalorder %s34, 2
      %p47 = scmp.ne.s32.totalorder %s42, %s44
      %p48 = scmp.eq.s32.totalorder %s34, 0
      %p49 = por %p47, %p48
      %p50 = scmp.ne.s32.totalorder %s42, %s44
      %p51 = scmp.eq.s32.totalorder %s39, 2
      %p52 = por %p50, %p51
      %p53 = scmp.ne.s32.totalorder %s44, %s45
      %p54 = scmp.eq.s32.totalorder %s39, 0
      %p55 = por %p53, %p54
      %p56 = scmp.ne.s32.totalorder %s44, %s45
      %p57 = scmp.eq.s32.totalorder %s40, 2
      %p58 = por %p56, %p57
      %p60 = scmp.ne.s32.totalorder %s45, %s59
      %p61 = scmp.eq.s32.totalorder %s40, 0
      %p62 = por %p60, %p61
      %s64 = sadd.s32 %s63, 1
      %p67 = scmp.eq.s32.totalorder %s34, 2
      %p68 = scmp.ne.s32.totalorder %s63, %s65
      %p69 = scmp.eq.s32.totalorder %s34, 0
      %p70 = por %p68, %p69
      %p71 = scmp.ne.s32.totalorder %s63, %s65
      %p72 = scmp.eq.s32.totalorder %s39, 2
      %p73 = por %p71, %p72
      %p74 = scmp.ne.s32.totalorder %s65, %s66
      %p75 = scmp.eq.s32.totalorder %s39, 0
      %p76 = por %p74, %p75
      %p77 = scmp.ne.s32.totalorder %s65, %s66
      %p78 = scmp.eq.s32.totalorder %s40, 2
      %p79 = por %p77, %p78
      %p81 = scmp.ne.s32.totalorder %s66, %s80
      %p82 = scmp.eq.s32.totalorder %s40, 0
      %p83 = por %p81, %p82
      %s85 = sadd.s32 %s84, 1
      %p88 = scmp.eq.s32.totalorder %s34, 2
      %p89 = scmp.ne.s32.totalorder %s84, %s86
      %p90 = scmp.eq.s32.totalorder %s34, 0
      %p91 = por %p89, %p90
      %p92 = scmp.ne.s32.totalorder %s84, %s86
      %p93 = scmp.eq.s32.totalorder %s39, 2
      %p94 = por %p92, %p93
      %p95 = scmp.ne.s32.totalorder %s86, %s87
      %p96 = scmp.eq.s32.totalorder %s39, 0
      %p97 = por %p95, %p96
      %p98 = scmp.ne.s32.totalorder %s86, %s87
      %p99 = scmp.eq.s32.totalorder %s40, 2
      %p100 = por %p98, %p99
      %p102 = scmp.ne.s32.totalorder %s87, %s101
      %p103 = scmp.eq.s32.totalorder %s40, 0
      %p104 = por %p102, %p103
      %s106 = sadd.s32 %s105, 1
      %p109 = scmp.eq.s32.totalorder %s34, 2
      %p110 = scmp.ne.s32.totalorder %s105, %s107
      %p111 = scmp.eq.s32.totalorder %s34, 0
      %p112 = por %p110, %p111
      %p113 = scmp.ne.s32.totalorder %s105, %s107
      %p114 = scmp.eq.s32.totalorder %s39, 2
      %p115 = por %p113, %p114
      %p116 = scmp.ne.s32.totalorder %s107, %s108
      %p117 = scmp.eq.s32.totalorder %s39, 0
      %p118 = por %p116, %p117
      %p119 = scmp.ne.s32.totalorder %s107, %s108
      %p120 = scmp.eq.s32.totalorder %s40, 2
      %p121 = por %p119, %p120
      %p123 = scmp.ne.s32.totalorder %s108, %s122
      %p124 = scmp.eq.s32.totalorder %s40, 0
      %p125 = por %p123, %p124
      %s127 = sadd.s32 %s126, 1
      %p130 = scmp.eq.s32.totalorder %s34, 2
      %p131 = scmp.ne.s32.totalorder %s126, %s128
      %p132 = scmp.eq.s32.totalorder %s34, 0
      %p133 = por %p131, %p132
      %p134 = scmp.ne.s32.totalorder %s126, %s128
      %p135 = scmp.eq.s32.totalorder %s39, 2
      %p136 = por %p134, %p135
      %p137 = scmp.ne.s32.totalorder %s128, %s129
      %p138 = scmp.eq.s32.totalorder %s39, 0
      %p139 = por %p137, %p138
      %p140 = scmp.ne.s32.totalorder %s128, %s129
      %p141 = scmp.eq.s32.totalorder %s40, 2
      %p142 = por %p140, %p141
      %p144 = scmp.ne.s32.totalorder %s129, %s143
      %p145 = scmp.eq.s32.totalorder %s40, 0
      %p146 = por %p144, %p145
      %s148 = sadd.s32 %s147, 1
      %p151 = scmp.eq.s32.totalorder %s34, 2
      %p152 = scmp.ne.s32.totalorder %s147, %s149
      %p153 = scmp.eq.s32.totalorder %s34, 0
      %p154 = por %p152, %p153
      %p155 = scmp.ne.s32.totalorder %s147, %s149
      %p156 = scmp.eq.s32.totalorder %s39, 2
      %p157 = por %p155, %p156
      %p158 = scmp.ne.s32.totalorder %s149, %s150
      %p159 = scmp.eq.s32.totalorder %s39, 0
      %p160 = por %p158, %p159
      %p161 = scmp.ne.s32.totalorder %s149, %s150
      %p162 = scmp.eq.s32.totalorder %s40, 2
      %p163 = por %p161, %p162
      %p165 = scmp.ne.s32.totalorder %s150, %s164
      %p166 = scmp.eq.s32.totalorder %s40, 0
      %p167 = por %p165, %p166
      %s169 = sadd.s32 %s168, 1
      %p172 = scmp.eq.s32.totalorder %s34, 2
      %p173 = scmp.ne.s32.totalorder %s168, %s170
      %p174 = scmp.eq.s32.totalorder %s34, 0
      %p175 = por %p173, %p174
      %p176 = scmp.ne.s32.totalorder %s168, %s170
      %p177 = scmp.eq.s32.totalorder %s39, 2
      %p178 = por %p176, %p177
      %p179 = scmp.ne.s32.totalorder %s170, %s171
      %p180 = scmp.eq.s32.totalorder %s39, 0
      %p181 = por %p179, %p180
      %p182 = scmp.ne.s32.totalorder %s170, %s171
      %p183 = scmp.eq.s32.totalorder %s40, 2
      %p184 = por %p182, %p183
      %p186 = scmp.ne.s32.totalorder %s171, %s185
      %p187 = scmp.eq.s32.totalorder %s40, 0
      %p188 = por %p186, %p187
      %s190 = sadd.s32 %s189, 1
      %p193 = scmp.eq.s32.totalorder %s34, 2
      %p194 = scmp.ne.s32.totalorder %s189, %s191
      %p195 = scmp.eq.s32.totalorder %s34, 0
      %p196 = por %p194, %p195
      %p197 = scmp.ne.s32.totalorder %s189, %s191
      %p198 = scmp.eq.s32.totalorder %s39, 2
      %p199 = por %p197, %p198
      %p200 = scmp.ne.s32.totalorder %s191, %s192
      %p201 = scmp.eq.s32.totalorder %s39, 0
      %p202 = por %p200, %p201
      %p203 = scmp.ne.s32.totalorder %s191, %s192
      %p204 = scmp.eq.s32.totalorder %s40, 2
      %p205 = por %p203, %p204
      %p207 = scmp.ne.s32.totalorder %s192, %s206
      %p208 = scmp.eq.s32.totalorder %s40, 0
      %p209 = por %p207, %p208
      %s211 = sadd.s32 %s210, 1
      %p214 = scmp.eq.s32.totalorder %s34, 2
      %p215 = scmp.ne.s32.totalorder %s210, %s212
      %p216 = scmp.eq.s32.totalorder %s34, 0
      %p217 = por %p215, %p216
      %p218 = scmp.ne.s32.totalorder %s210, %s212
      %p219 = scmp.eq.s32.totalorder %s39, 2
      %p220 = por %p218, %p219
      %p221 = scmp.ne.s32.totalorder %s212, %s213
      %p222 = scmp.eq.s32.totalorder %s39, 0
      %p223 = por %p221, %p222
      %p224 = scmp.ne.s32.totalorder %s212, %s213
      %p225 = scmp.eq.s32.totalorder %s40, 2
      %p226 = por %p224, %p225
      %p228 = scmp.ne.s32.totalorder %s213, %s227
      %p229 = scmp.eq.s32.totalorder %s40, 0
      %p230 = por %p228, %p229
      %s232 = sadd.s32 %s231, 1
      %p235 = scmp.eq.s32.totalorder %s34, 2
      %p236 = scmp.ne.s32.totalorder %s231, %s233
      %p237 = scmp.eq.s32.totalorder %s34, 0
      %p238 = por %p236, %p237
      %p239 = scmp.ne.s32.totalorder %s231, %s233
      %p240 = scmp.eq.s32.totalorder %s39, 2
      %p241 = por %p239, %p240
      %p242 = scmp.ne.s32.totalorder %s233, %s234
      %p243 = scmp.eq.s32.totalorder %s39, 0
      %p244 = por %p242, %p243
      %p245 = scmp.ne.s32.totalorder %s233, %s234
      %p246 = scmp.eq.s32.totalorder %s40, 2
      %p247 = por %p245, %p246
      %p249 = scmp.ne.s32.totalorder %s234, %s248
      %p250 = scmp.eq.s32.totalorder %s40, 0
      %p251 = por %p249, %p250
      %s253 = sadd.s32 %s252, 1
      %p256 = scmp.eq.s32.totalorder %s34, 2
      %p257 = scmp.ne.s32.totalorder %s252, %s254
      %p258 = scmp.eq.s32.totalorder %s34, 0
      %p259 = por %p257, %p258
      %p260 = scmp.ne.s32.totalorder %s252, %s254
      %p261 = scmp.eq.s32.totalorder %s39, 2
      %p262 = por %p260, %p261
      %p263 = scmp.ne.s32.totalorder %s254, %s255
      %p264 = scmp.eq.s32.totalorder %s39, 0
      %p265 = por %p263, %p264
      %p266 = scmp.ne.s32.totalorder %s254, %s255
      %p267 = scmp.eq.s32.totalorder %s40, 2
      %p268 = por %p266, %p267
      %p270 = scmp.ne.s32.totalorder %s255, %s269
      %p271 = scmp.eq.s32.totalorder %s40, 0
      %p272 = por %p270, %p271
      %s274 = sadd.s32 %s273, 1
      %p277 = scmp.eq.s32.totalorder %s34, 2
      %p278 = scmp.ne.s32.totalorder %s273, %s275
      %p279 = scmp.eq.s32.totalorder %s34, 0
      %p280 = por %p278, %p279
      %p281 = scmp.ne.s32.totalorder %s273, %s275
      %p282 = scmp.eq.s32.totalorder %s39, 2
      %p283 = por %p281, %p282
      %p284 = scmp.ne.s32.totalorder %s275, %s276
      %p285 = scmp.eq.s32.totalorder %s39, 0
      %p286 = por %p284, %p285
      %p287 = scmp.ne.s32.totalorder %s275, %s276
      %p288 = scmp.eq.s32.totalorder %s40, 2
      %p289 = por %p287, %p288
      %p291 = scmp.ne.s32.totalorder %s276, %s290
      %p292 = scmp.eq.s32.totalorder %s40, 0
      %p293 = por %p291, %p292
      %s294 = ssub.s32 %s34, %s41
      %p295 = scmp.eq.s32.totalorder %s294, 0
      %s297 = sadd.s32 %s296, 1
      %s298 = scalar_select %p295, %s296, %s297
      %p301 = pneg %p295
      %p302 = scmp.eq.s32.totalorder %s34, 2
      %p303 = por %p301, %p302
      %p304 = scmp.ne.s32.totalorder %s296, %s299
      %p305 = scmp.eq.s32.totalorder %s34, 0
      %p306 = por %p304, %p305
      %p307 = scmp.ne.s32.totalorder %s296, %s299
      %p308 = scmp.eq.s32.totalorder %s39, 2
      %p309 = por %p307, %p308
      %p310 = scmp.ne.s32.totalorder %s299, %s300
      %p311 = scmp.eq.s32.totalorder %s39, 0
      %p312 = por %p310, %p311
      %p313 = scmp.ne.s32.totalorder %s299, %s300
      %p314 = scmp.eq.s32.totalorder %s40, 2
      %p315 = por %p313, %p314
      %p317 = scmp.ne.s32.totalorder %s300, %s316
      %p318 = scmp.eq.s32.totalorder %s40, 0
      %p319 = por %p317, %p318
      %s320 = ssub.s32 %s34, %s41
      %p321 = scmp.eq.s32.totalorder %s320, 0
      %s323 = sadd.s32 %s322, 1
      %s324 = scalar_select %p321, %s322, %s323
      %p327 = pneg %p321
      %p328 = scmp.eq.s32.totalorder %s34, 2
      %p329 = por %p327, %p328
      %p330 = scmp.ne.s32.totalorder %s322, %s325
      %p331 = scmp.eq.s32.totalorder %s34, 0
      %p332 = por %p330, %p331
      %p333 = scmp.ne.s32.totalorder %s322, %s325
      %p334 = scmp.eq.s32.totalorder %s39, 2
      %p335 = por %p333, %p334
      %p336 = scmp.ne.s32.totalorder %s325, %s326
      %p337 = scmp.eq.s32.totalorder %s39, 0
      %p338 = por %p336, %p337
      %p339 = scmp.ne.s32.totalorder %s325, %s326
      %p340 = scmp.eq.s32.totalorder %s40, 2
      %p341 = por %p339, %p340
      %p343 = scmp.ne.s32.totalorder %s326, %s342
      %p344 = scmp.eq.s32.totalorder %s40, 0
      %p345 = por %p343, %p344
      %s346 = ssub.s32 %s34, %s41
      %p347 = scmp.eq.s32.totalorder %s346, 0
      %s349 = sadd.s32 %s348, 1
      %s350 = scalar_select %p347, %s348, %s349
      %p353 = pneg %p347
      %p354 = scmp.eq.s32.totalorder %s34, 2
      %p355 = por %p353, %p354
      %p356 = scmp.ne.s32.totalorder %s348, %s351
      %p357 = scmp.eq.s32.totalorder %s34, 0
      %p358 = por %p356, %p357
      %p359 = scmp.ne.s32.totalorder %s348, %s351
      %p360 = scmp.eq.s32.totalorder %s39, 2
      %p361 = por %p359, %p360
      %p362 = scmp.ne.s32.totalorder %s351, %s352
      %p363 = scmp.eq.s32.totalorder %s39, 0
      %p364 = por %p362, %p363
      %p365 = scmp.ne.s32.totalorder %s351, %s352
      %p366 = scmp.eq.s32.totalorder %s40, 2
      %p367 = por %p365, %p366
      %p369 = scmp.ne.s32.totalorder %s352, %s368
      %p370 = scmp.eq.s32.totalorder %s40, 0
      %p371 = por %p369, %p370
      %s372 = ssub.s32 %s34, %s41
      %p373 = scmp.eq.s32.totalorder %s372, 0
      %s375 = sadd.s32 %s374, 1
      %s376 = scalar_select %p373, %s374, %s375
      %p379 = pneg %p373
      %p380 = scmp.eq.s32.totalorder %s34, 2
      %p381 = por %p379, %p380
      %p382 = scmp.ne.s32.totalorder %s374, %s377
      %p383 = scmp.eq.s32.totalorder %s34, 0
      %p384 = por %p382, %p383
      %p385 = scmp.ne.s32.totalorder %s374, %s377
      %p386 = scmp.eq.s32.totalorder %s39, 2
      %p387 = por %p385, %p386
      %p388 = scmp.ne.s32.totalorder %s377, %s378
      %p389 = scmp.eq.s32.totalorder %s39, 0
      %p390 = por %p388, %p389
      %p391 = scmp.ne.s32.totalorder %s377, %s378
      %p392 = scmp.eq.s32.totalorder %s40, 2
      %p393 = por %p391, %p392
      %p395 = scmp.ne.s32.totalorder %s378, %s394
      %p396 = scmp.eq.s32.totalorder %s40, 0
      %p397 = por %p395, %p396
      %s398 = ssub.s32 %s34, %s41
      %p399 = scmp.eq.s32.totalorder %s398, 0
      %s401 = sadd.s32 %s400, 1
      %s402 = scalar_select %p399, %s400, %s401
      %p405 = pneg %p399
      %p406 = scmp.eq.s32.totalorder %s34, 2
      %p407 = por %p405, %p406
      %p408 = scmp.ne.s32.totalorder %s400, %s403
      %p409 = scmp.eq.s32.totalorder %s34, 0
      %p410 = por %p408, %p409
      %p411 = scmp.ne.s32.totalorder %s400, %s403
      %p412 = scmp.eq.s32.totalorder %s39, 2
      %p413 = por %p411, %p412
      %p414 = scmp.ne.s32.totalorder %s403, %s404
      %p415 = scmp.eq.s32.totalorder %s39, 0
      %p416 = por %p414, %p415
      %p417 = scmp.ne.s32.totalorder %s403, %s404
      %p418 = scmp.eq.s32.totalorder %s40, 2
      %p419 = por %p417, %p418
      %p421 = scmp.ne.s32.totalorder %s404, %s420
      %p422 = scmp.eq.s32.totalorder %s40, 0
      %p423 = por %p421, %p422
      %s424 = ssub.s32 %s34, %s41
      %p425 = scmp.eq.s32.totalorder %s424, 0
      %s427 = sadd.s32 %s426, 1
      %s428 = scalar_select %p425, %s426, %s427
      %p431 = pneg %p425
      %p432 = scmp.eq.s32.totalorder %s34, 2
      %p433 = por %p431, %p432
      %p434 = scmp.ne.s32.totalorder %s426, %s429
      %p435 = scmp.eq.s32.totalorder %s34, 0
      %p436 = por %p434, %p435
      %p437 = scmp.ne.s32.totalorder %s426, %s429
      %p438 = scmp.eq.s32.totalorder %s39, 2
      %p439 = por %p437, %p438
      %p440 = scmp.ne.s32.totalorder %s429, %s430
      %p441 = scmp.eq.s32.totalorder %s39, 0
      %p442 = por %p440, %p441
      %p443 = scmp.ne.s32.totalorder %s429, %s430
      %p444 = scmp.eq.s32.totalorder %s40, 2
      %p445 = por %p443, %p444
      %p447 = scmp.ne.s32.totalorder %s430, %s446
      %p448 = scmp.eq.s32.totalorder %s40, 0
      %p449 = por %p447, %p448
      %s450 = ssub.s32 %s34, %s41
      %p451 = scmp.eq.s32.totalorder %s450, 0
      %s453 = sadd.s32 %s452, 1
      %s454 = scalar_select %p451, %s452, %s453
      %p457 = pneg %p451
      %p458 = scmp.eq.s32.totalorder %s34, 2
      %p459 = por %p457, %p458
      %p460 = scmp.ne.s32.totalorder %s452, %s455
      %p461 = scmp.eq.s32.totalorder %s34, 0
      %p462 = por %p460, %p461
      %p463 = scmp.ne.s32.totalorder %s452, %s455
      %p464 = scmp.eq.s32.totalorder %s39, 2
      %p465 = por %p463, %p464
      %p466 = scmp.ne.s32.totalorder %s455, %s456
      %p467 = scmp.eq.s32.totalorder %s39, 0
      %p468 = por %p466, %p467
      %p469 = scmp.ne.s32.totalorder %s455, %s456
      %p470 = scmp.eq.s32.totalorder %s40, 2
      %p471 = por %p469, %p470
      %p473 = scmp.ne.s32.totalorder %s456, %s472
      %p474 = scmp.eq.s32.totalorder %s40, 0
      %p475 = por %p473, %p474
      %s476 = ssub.s32 %s34, %s41
      %p477 = scmp.eq.s32.totalorder %s476, 0
      %s479 = sadd.s32 %s478, 1
      %s480 = scalar_select %p477, %s478, %s479
      %p483 = pneg %p477
      %p484 = scmp.eq.s32.totalorder %s34, 2
      %p485 = por %p483, %p484
      %p486 = scmp.ne.s32.totalorder %s478, %s481
      %p487 = scmp.eq.s32.totalorder %s34, 0
      %p488 = por %p486, %p487
      %p489 = scmp.ne.s32.totalorder %s478, %s481
      %p490 = scmp.eq.s32.totalorder %s39, 2
      %p491 = por %p489, %p490
      %p492 = scmp.ne.s32.totalorder %s481, %s482
      %p493 = scmp.eq.s32.totalorder %s39, 0
      %p494 = por %p492, %p493
      %p495 = scmp.ne.s32.totalorder %s481, %s482
      %p496 = scmp.eq.s32.totalorder %s40, 2
      %p497 = por %p495, %p496
      %p499 = scmp.ne.s32.totalorder %s482, %s498
      %p500 = scmp.eq.s32.totalorder %s40, 0
      %p501 = por %p499, %p500
      %s502 = ssub.s32 %s34, %s41
      %p503 = scmp.eq.s32.totalorder %s502, 0
      %s505 = sadd.s32 %s504, 1
      %s506 = scalar_select %p503, %s504, %s505
      %p509 = pneg %p503
      %p510 = scmp.eq.s32.totalorder %s34, 2
      %p511 = por %p509, %p510
      %p512 = scmp.ne.s32.totalorder %s504, %s507
      %p513 = scmp.eq.s32.totalorder %s34, 0
      %p514 = por %p512, %p513
      %p515 = scmp.ne.s32.totalorder %s504, %s507
      %p516 = scmp.eq.s32.totalorder %s39, 2
      %p517 = por %p515, %p516
      %p518 = scmp.ne.s32.totalorder %s507, %s508
      %p519 = scmp.eq.s32.totalorder %s39, 0
      %p520 = por %p518, %p519
      %p521 = scmp.ne.s32.totalorder %s507, %s508
      %p522 = scmp.eq.s32.totalorder %s40, 2
      %p523 = por %p521, %p522
      %p525 = scmp.ne.s32.totalorder %s508, %s524
      %p526 = scmp.eq.s32.totalorder %s40, 0
      %p527 = por %p525, %p526
      %s528 = ssub.s32 %s34, %s41
      %p529 = scmp.eq.s32.totalorder %s528, 0
      %s531 = sadd.s32 %s530, 1
      %s532 = scalar_select %p529, %s530, %s531
      %p535 = pneg %p529
      %p536 = scmp.eq.s32.totalorder %s34, 2
      %p537 = por %p535, %p536
      %p538 = scmp.ne.s32.totalorder %s530, %s533
      %p539 = scmp.eq.s32.totalorder %s34, 0
      %p540 = por %p538, %p539
      %p541 = scmp.ne.s32.totalorder %s530, %s533
      %p542 = scmp.eq.s32.totalorder %s39, 2
      %p543 = por %p541, %p542
      %p544 = scmp.ne.s32.totalorder %s533, %s534
      %p545 = scmp.eq.s32.totalorder %s39, 0
      %p546 = por %p544, %p545
      %p547 = scmp.ne.s32.totalorder %s533, %s534
      %p548 = scmp.eq.s32.totalorder %s40, 2
      %p549 = por %p547, %p548
      %p551 = scmp.ne.s32.totalorder %s534, %s550
      %p552 = scmp.eq.s32.totalorder %s40, 0
      %p553 = por %p551, %p552
      %s554 = ssub.s32 %s34, %s41
      %p555 = scmp.eq.s32.totalorder %s554, 0
      %s557 = sadd.s32 %s556, 1
      %s558 = scalar_select %p555, %s556, %s557
      %p561 = pneg %p555
      %p562 = scmp.eq.s32.totalorder %s34, 2
      %p563 = por %p561, %p562
      %p564 = scmp.ne.s32.totalorder %s556, %s559
      %p565 = scmp.eq.s32.totalorder %s34, 0
      %p566 = por %p564, %p565
      %p567 = scmp.ne.s32.totalorder %s556, %s559
      %p568 = scmp.eq.s32.totalorder %s39, 2
      %p569 = por %p567, %p568
      %p570 = scmp.ne.s32.totalorder %s559, %s560
      %p571 = scmp.eq.s32.totalorder %s39, 0
      %p572 = por %p570, %p571
      %p573 = scmp.ne.s32.totalorder %s559, %s560
      %p574 = scmp.eq.s32.totalorder %s40, 2
      %p575 = por %p573, %p574
      %p577 = scmp.ne.s32.totalorder %s560, %s576
      %p578 = scmp.eq.s32.totalorder %s40, 0
      %p579 = por %p577, %p578
      %s581 = sadd.s32 %s580, 1
      %p584 = scmp.eq.s32.totalorder %s34, 2
      %p585 = scmp.ne.s32.totalorder %s580, %s582
      %p586 = scmp.eq.s32.totalorder %s34, 0
      %p587 = por %p585, %p586
      %p588 = scmp.ne.s32.totalorder %s580, %s582
      %p589 = scmp.eq.s32.totalorder %s39, 2
      %p590 = por %p588, %p589
      %p591 = scmp.ne.s32.totalorder %s582, %s583
      %p592 = scmp.eq.s32.totalorder %s39, 0
      %p593 = por %p591, %p592
      %p594 = scmp.ne.s32.totalorder %s582, %s583
      %p595 = scmp.eq.s32.totalorder %s40, 2
      %p596 = por %p594, %p595
      %p598 = scmp.ne.s32.totalorder %s583, %s597
      %p599 = scmp.eq.s32.totalorder %s40, 0
      %p600 = por %p598, %p599
      %s602 = sadd.s32 %s601, 1
      %p605 = scmp.eq.s32.totalorder %s34, 2
      %p606 = scmp.ne.s32.totalorder %s601, %s603
      %p607 = scmp.eq.s32.totalorder %s34, 0
      %p608 = por %p606, %p607
      %p609 = scmp.ne.s32.totalorder %s601, %s603
      %p610 = scmp.eq.s32.totalorder %s39, 2
      %p611 = por %p609, %p610
      %p612 = scmp.ne.s32.totalorder %s603, %s604
      %p613 = scmp.eq.s32.totalorder %s39, 0
      %p614 = por %p612, %p613
      %p615 = scmp.ne.s32.totalorder %s603, %s604
      %p616 = scmp.eq.s32.totalorder %s40, 2
      %p617 = por %p615, %p616
      %p619 = scmp.ne.s32.totalorder %s604, %s618
      %p620 = scmp.eq.s32.totalorder %s40, 0
      %p621 = por %p619, %p620
      %s623 = sadd.s32 %s622, 1
      %p626 = scmp.eq.s32.totalorder %s34, 2
      %p627 = scmp.ne.s32.totalorder %s622, %s624
      %p628 = scmp.eq.s32.totalorder %s34, 0
      %p629 = por %p627, %p628
      %p630 = scmp.ne.s32.totalorder %s622, %s624
      %p631 = scmp.eq.s32.totalorder %s39, 2
      %p632 = por %p630, %p631
      %p633 = scmp.ne.s32.totalorder %s624, %s625
      %p634 = scmp.eq.s32.totalorder %s39, 0
      %p635 = por %p633, %p634
      %p636 = scmp.ne.s32.totalorder %s624, %s625
      %p637 = scmp.eq.s32.totalorder %s40, 2
      %p638 = por %p636, %p637
      %p640 = scmp.ne.s32.totalorder %s625, %s639
      %p641 = scmp.eq.s32.totalorder %s40, 0
      %p642 = por %p640, %p641
      %p643 = scmp.le.s32.totalorder 1, %s34
      %p644 = scmp.lt.s32.totalorder %s34, 4
      %p645 = pnand %p643, %p644
      %p646 = pneg %p645
      // Predicated region
      $region9: #{egnn_encoder_forward.1} parent=5 // pred_check
        _
      $region10: #{egnn_encoder_forward.1} parent=5 // pred_check_branch
        %648 = sbr.rel (%p645) target = $region12
      $region11: #{egnn_encoder_forward.1} parent=5 // pred_region
        %s649 = ssub.s32 %s34, 1
        // Predicated region
        $region13: #{egnn_encoder_forward.1} parent=11 // pred_check
          %p650 = pneg %p55
        $region14: #{egnn_encoder_forward.1} parent=11 // pred_check_branch
          %652 = sbr.rel (%p650) target = $region16
        $region15: #{egnn_encoder_forward.1} parent=11 // pred_region
          _
        $region16: #{egnn_encoder_forward.1} parent=11 // pred_fallthru
          _
        // Predicated region
        $region17: #{egnn_encoder_forward.1} parent=11 // pred_check
          %p653 = pneg %p76
        $region18: #{egnn_encoder_forward.1} parent=11 // pred_check_branch
          %655 = sbr.rel (%p653) target = $region20
        $region19: #{egnn_encoder_forward.1} parent=11 // pred_region
          _
        $region20: #{egnn_encoder_forward.1} parent=11 // pred_fallthru
          _
        // Predicated region
        $region21: #{egnn_encoder_forward.1} parent=11 // pred_check
          %p656 = pneg %p97
        $region22: #{egnn_encoder_forward.1} parent=11 // pred_check_branch
          %658 = sbr.rel (%p656) target = $region24
        $region23: #{egnn_encoder_forward.1} parent=11 // pred_region
          _
        $region24: #{egnn_encoder_forward.1} parent=11 // pred_fallthru
          _
        // Predicated region
        $region25: #{egnn_encoder_forward.1} parent=11 // pred_check
          %p659 = pneg %p118
        $region26: #{egnn_encoder_forward.1} parent=11 // pred_check_branch
          %661 = sbr.rel (%p659) target = $region28
        $region27: #{egnn_encoder_forward.1} parent=11 // pred_region
          _
        $region28: #{egnn_encoder_forward.1} parent=11 // pred_fallthru
          _
        // Predicated region
        $region29: #{egnn_encoder_forward.1} parent=11 // pred_check
          %p662 = pneg %p139
        $region30: #{egnn_encoder_forward.1} parent=11 // pred_check_branch
          %664 = sbr.rel (%p662) target = $region32
        $region31: #{egnn_encoder_forward.1} parent=11 // pred_region
          _
        $region32: #{egnn_encoder_forward.1} parent=11 // pred_fallthru
          _
        // Predicated region
        $region33: #{egnn_encoder_forward.1} parent=11 // pred_check
          %p665 = pneg %p160
        $region34: #{egnn_encoder_forward.1} parent=11 // pred_check_branch
          %667 = sbr.rel (%p665) target = $region36
        $region35: #{egnn_encoder_forward.1} parent=11 // pred_region
          _
        $region36: #{egnn_encoder_forward.1} parent=11 // pred_fallthru
          _
        // Predicated region
        $region37: #{egnn_encoder_forward.1} parent=11 // pred_check
          %p668 = pneg %p181
        $region38: #{egnn_encoder_forward.1} parent=11 // pred_check_branch
          %670 = sbr.rel (%p668) target = $region40
        $region39: #{egnn_encoder_forward.1} parent=11 // pred_region
          _
        $region40: #{egnn_encoder_forward.1} parent=11 // pred_fallthru
          _
        // Predicated region
        $region41: #{egnn_encoder_forward.1} parent=11 // pred_check
          %p671 = pneg %p202
        $region42: #{egnn_encoder_forward.1} parent=11 // pred_check_branch
          %673 = sbr.rel (%p671) target = $region44
        $region43: #{egnn_encoder_forward.1} parent=11 // pred_region
          _
        $region44: #{egnn_encoder_forward.1} parent=11 // pred_fallthru
          _
        // Predicated region
        $region45: #{egnn_encoder_forward.1} parent=11 // pred_check
          %p674 = pneg %p223
        $region46: #{egnn_encoder_forward.1} parent=11 // pred_check_branch
          %676 = sbr.rel (%p674) target = $region48
        $region47: #{egnn_encoder_forward.1} parent=11 // pred_region
          _
        $region48: #{egnn_encoder_forward.1} parent=11 // pred_fallthru
          _
        // Predicated region
        $region49: #{egnn_encoder_forward.1} parent=11 // pred_check
          %p677 = pneg %p244
        $region50: #{egnn_encoder_forward.1} parent=11 // pred_check_branch
          %679 = sbr.rel (%p677) target = $region52
        $region51: #{egnn_encoder_forward.1} parent=11 // pred_region
          _
        $region52: #{egnn_encoder_forward.1} parent=11 // pred_fallthru
          _
        // Predicated region
        $region53: #{egnn_encoder_forward.1} parent=11 // pred_check
          %p680 = pneg %p265
        $region54: #{egnn_encoder_forward.1} parent=11 // pred_check_branch
          %682 = sbr.rel (%p680) target = $region56
        $region55: #{egnn_encoder_forward.1} parent=11 // pred_region
          _
        $region56: #{egnn_encoder_forward.1} parent=11 // pred_fallthru
          _
        // Predicated region
        $region57: #{egnn_encoder_forward.1} parent=11 // pred_check
          %p683 = pneg %p286
        $region58: #{egnn_encoder_forward.1} parent=11 // pred_check_branch
          %685 = sbr.rel (%p683) target = $region60
        $region59: #{egnn_encoder_forward.1} parent=11 // pred_region
          _
        $region60: #{egnn_encoder_forward.1} parent=11 // pred_fallthru
          _
      $region12: #{egnn_encoder_forward.1} parent=5 // pred_fallthru
        _
      %p686 = scmp.lt.s32.totalorder %s34, 3
      // Predicated region
      $region61: #{egnn_encoder_forward.1} parent=5 // pred_check
        %p687 = pneg %p686
      $region62: #{egnn_encoder_forward.1} parent=5 // pred_check_branch
        %689 = sbr.rel (%p687) target = $region64
      $region63: #{egnn_encoder_forward.1} parent=5 // pred_region
        // Predicated region
        $region65: #{egnn_encoder_forward.1} parent=63 // pred_check
          %p690 = pneg %p306
        $region66: #{egnn_encoder_forward.1} parent=63 // pred_check_branch
          %692 = sbr.rel (%p690) target = $region68
        $region67: #{egnn_encoder_forward.1} parent=63 // pred_region
          %p693 = scmp.lt.s32.totalorder %s34, 2
          %s694 = scalar_select %p693, %s34, 2
          %s695 = smul.addr %s694, 9
          %s696 = smul.addr %s695, 8
          %s697 = scalar_lea.vmem %s12, %s696
        $region68: #{egnn_encoder_forward.1} parent=63 // pred_fallthru
          _
        // Predicated region
        $region69: #{egnn_encoder_forward.1} parent=63 // pred_check
          %p698 = pneg %p332
        $region70: #{egnn_encoder_forward.1} parent=63 // pred_check_branch
          %700 = sbr.rel (%p698) target = $region72
        $region71: #{egnn_encoder_forward.1} parent=63 // pred_region
          %p701 = scmp.lt.s32.totalorder %s34, 2
          %s702 = scalar_select %p701, %s34, 2
          %s703 = scalar_lea.vmem %s13, %s702
        $region72: #{egnn_encoder_forward.1} parent=63 // pred_fallthru
          _
        // Predicated region
        $region73: #{egnn_encoder_forward.1} parent=63 // pred_check
          %p704 = pneg %p358
        $region74: #{egnn_encoder_forward.1} parent=63 // pred_check_branch
          %706 = sbr.rel (%p704) target = $region76
        $region75: #{egnn_encoder_forward.1} parent=63 // pred_region
          %p707 = scmp.lt.s32.totalorder %s34, 2
          %s708 = scalar_select %p707, %s34, 2
          %s709 = smul.addr %s708, 4
          %s710 = smul.addr %s709, 8
          %s711 = scalar_lea.vmem %s14, %s710
        $region76: #{egnn_encoder_forward.1} parent=63 // pred_fallthru
          _
        // Predicated region
        $region77: #{egnn_encoder_forward.1} parent=63 // pred_check
          %p712 = pneg %p384
        $region78: #{egnn_encoder_forward.1} parent=63 // pred_check_branch
          %714 = sbr.rel (%p712) target = $region80
        $region79: #{egnn_encoder_forward.1} parent=63 // pred_region
          %p715 = scmp.lt.s32.totalorder %s34, 2
          %s716 = scalar_select %p715, %s34, 2
          %s717 = scalar_lea.vmem %s15, %s716
        $region80: #{egnn_encoder_forward.1} parent=63 // pred_fallthru
          _
        // Predicated region
        $region81: #{egnn_encoder_forward.1} parent=63 // pred_check
          %p718 = pneg %p410
        $region82: #{egnn_encoder_forward.1} parent=63 // pred_check_branch
          %720 = sbr.rel (%p718) target = $region84
        $region83: #{egnn_encoder_forward.1} parent=63 // pred_region
          %p721 = scmp.lt.s32.totalorder %s34, 2
          %s722 = scalar_select %p721, %s34, 2
          %s723 = smul.addr %s722, 4
          %s724 = smul.addr %s723, 8
          %s725 = scalar_lea.vmem %s16, %s724
        $region84: #{egnn_encoder_forward.1} parent=63 // pred_fallthru
          _
        // Predicated region
        $region85: #{egnn_encoder_forward.1} parent=63 // pred_check
          %p726 = pneg %p436
        $region86: #{egnn_encoder_forward.1} parent=63 // pred_check_branch
          %728 = sbr.rel (%p726) target = $region88
        $region87: #{egnn_encoder_forward.1} parent=63 // pred_region
          %p729 = scmp.lt.s32.totalorder %s34, 2
          %s730 = scalar_select %p729, %s34, 2
          %s731 = scalar_lea.vmem %s17, %s730
        $region88: #{egnn_encoder_forward.1} parent=63 // pred_fallthru
          _
        // Predicated region
        $region89: #{egnn_encoder_forward.1} parent=63 // pred_check
          %p732 = pneg %p462
        $region90: #{egnn_encoder_forward.1} parent=63 // pred_check_branch
          %734 = sbr.rel (%p732) target = $region92
        $region91: #{egnn_encoder_forward.1} parent=63 // pred_region
          %p735 = scmp.lt.s32.totalorder %s34, 2
          %s736 = scalar_select %p735, %s34, 2
          %s737 = scalar_lea.vmem %s18, %s736
        $region92: #{egnn_encoder_forward.1} parent=63 // pred_fallthru
          _
        // Predicated region
        $region93: #{egnn_encoder_forward.1} parent=63 // pred_check
          %p738 = pneg %p488
        $region94: #{egnn_encoder_forward.1} parent=63 // pred_check_branch
          %740 = sbr.rel (%p738) target = $region96
        $region95: #{egnn_encoder_forward.1} parent=63 // pred_region
          %p741 = scmp.lt.s32.totalorder %s34, 2
          %s742 = scalar_select %p741, %s34, 2
          %s743 = smul.addr %s742, 8
          %s744 = smul.addr %s743, 8
          %s745 = scalar_lea.vmem %s19, %s744
        $region96: #{egnn_encoder_forward.1} parent=63 // pred_fallthru
          _
        // Predicated region
        $region97: #{egnn_encoder_forward.1} parent=63 // pred_check
          %p746 = pneg %p514
        $region98: #{egnn_encoder_forward.1} parent=63 // pred_check_branch
          %748 = sbr.rel (%p746) target = $region100
        $region99: #{egnn_encoder_forward.1} parent=63 // pred_region
          %p749 = scmp.lt.s32.totalorder %s34, 2
          %s750 = scalar_select %p749, %s34, 2
          %s751 = scalar_lea.vmem %s20, %s750
        $region100: #{egnn_encoder_forward.1} parent=63 // pred_fallthru
          _
        // Predicated region
        $region101: #{egnn_encoder_forward.1} parent=63 // pred_check
          %p752 = pneg %p540
        $region102: #{egnn_encoder_forward.1} parent=63 // pred_check_branch
          %754 = sbr.rel (%p752) target = $region104
        $region103: #{egnn_encoder_forward.1} parent=63 // pred_region
          %p755 = scmp.lt.s32.totalorder %s34, 2
          %s756 = scalar_select %p755, %s34, 2
          %s757 = smul.addr %s756, 4
          %s758 = smul.addr %s757, 8
          %s759 = scalar_lea.vmem %s21, %s758
        $region104: #{egnn_encoder_forward.1} parent=63 // pred_fallthru
          _
        // Predicated region
        $region105: #{egnn_encoder_forward.1} parent=63 // pred_check
          %p760 = pneg %p566
        $region106: #{egnn_encoder_forward.1} parent=63 // pred_check_branch
          %762 = sbr.rel (%p760) target = $region108
        $region107: #{egnn_encoder_forward.1} parent=63 // pred_region
          %p763 = scmp.lt.s32.totalorder %s34, 2
          %s764 = scalar_select %p763, %s34, 2
          %s765 = scalar_lea.vmem %s22, %s764
        $region108: #{egnn_encoder_forward.1} parent=63 // pred_fallthru
          _
      $region64: #{egnn_encoder_forward.1} parent=5 // pred_fallthru
        _
      %p766 = scmp.le.s32.totalorder 1, %s34
      %p767 = scmp.lt.s32.totalorder %s34, 4
      %p768 = pnand %p766, %p767
      %p769 = pneg %p768
      // Predicated region
      $region109: #{egnn_encoder_forward.1} parent=5 // pred_check
        _
      $region110: #{egnn_encoder_forward.1} parent=5 // pred_check_branch
        %771 = sbr.rel (%p768) target = $region112
      $region111: #{egnn_encoder_forward.1} parent=5 // pred_region
        %s772 = ssub.s32 %s34, 1
        %p773 = pneg %p55
        %p774 = pneg %p52
        %p775 = pneg %p76
        %p776 = pneg %p73
        %p777 = pneg %p97
        %p778 = pneg %p94
        %p779 = pneg %p118
        %p780 = pneg %p115
        %p781 = pneg %p139
        %p782 = pneg %p136
        %p783 = pneg %p160
        %p784 = pneg %p157
        %p785 = pneg %p181
        %p786 = pneg %p178
        %p787 = pneg %p202
        %p788 = pneg %p199
        %p789 = pneg %p223
        %p790 = pneg %p220
        %p791 = pneg %p244
        %p792 = pneg %p241
        %p793 = pneg %p265
        %p794 = pneg %p262
        %p795 = pneg %p286
        %p796 = pneg %p283
        %p797 = scmp.lt.s32.totalorder %s39, 2
        %s798 = scalar_select %p797, %s39, 2
        %s799 = smul.addr %s798, 9
        %s800 = smul.addr %s799, 8
        %s801 = scalar_lea.vmem %s12, %s800
        %p802 = pneg %p312
        %p803 = pneg %p309
        %p804 = scmp.lt.s32.totalorder %s39, 2
        %s805 = scalar_select %p804, %s39, 2
        %s806 = scalar_lea.vmem %s13, %s805
        %p807 = pneg %p338
        %p808 = pneg %p335
        %p809 = scmp.lt.s32.totalorder %s39, 2
        %s810 = scalar_select %p809, %s39, 2
        %s811 = smul.addr %s810, 4
        %s812 = smul.addr %s811, 8
        %s813 = scalar_lea.vmem %s14, %s812
        %p814 = pneg %p364
        %p815 = pneg %p361
        %p816 = scmp.lt.s32.totalorder %s39, 2
        %s817 = scalar_select %p816, %s39, 2
        %s818 = scalar_lea.vmem %s15, %s817
        %p819 = pneg %p390
        %p820 = pneg %p387
        %p821 = scmp.lt.s32.totalorder %s39, 2
        %s822 = scalar_select %p821, %s39, 2
        %s823 = smul.addr %s822, 4
        %s824 = smul.addr %s823, 8
        %s825 = scalar_lea.vmem %s16, %s824
        %p826 = pneg %p416
        %p827 = pneg %p413
        %p828 = scmp.lt.s32.totalorder %s39, 2
        %s829 = scalar_select %p828, %s39, 2
        %s830 = scalar_lea.vmem %s17, %s829
        %p831 = pneg %p442
        %p832 = pneg %p439
        %p833 = scmp.lt.s32.totalorder %s39, 2
        %s834 = scalar_select %p833, %s39, 2
        %s835 = scalar_lea.vmem %s18, %s834
        %p836 = pneg %p468
        %p837 = pneg %p465
        %p838 = scmp.lt.s32.totalorder %s39, 2
        %s839 = scalar_select %p838, %s39, 2
        %s840 = smul.addr %s839, 8
        %s841 = smul.addr %s840, 8
        %s842 = scalar_lea.vmem %s19, %s841
        %p843 = pneg %p494
        %p844 = pneg %p491
        %p845 = scmp.lt.s32.totalorder %s39, 2
        %s846 = scalar_select %p845, %s39, 2
        %s847 = scalar_lea.vmem %s20, %s846
        %p848 = pneg %p520
        %p849 = pneg %p517
        %p850 = scmp.lt.s32.totalorder %s39, 2
        %s851 = scalar_select %p850, %s39, 2
        %s852 = smul.addr %s851, 4
        %s853 = smul.addr %s852, 8
        %s854 = scalar_lea.vmem %s21, %s853
        %p855 = pneg %p546
        %p856 = pneg %p543
        %p857 = scmp.lt.s32.totalorder %s39, 2
        %s858 = scalar_select %p857, %s39, 2
        %s859 = scalar_lea.vmem %s22, %s858
        %p860 = pneg %p572
        %p861 = pneg %p569
        %p862 = pneg %p593
        %p863 = pneg %p590
        %p864 = pneg %p614
        %p865 = pneg %p611
        %p866 = pneg %p635
        %p867 = pneg %p632
        %p868 = scmp.lt.s32.totalorder %s39, 2
        %s869 = scalar_select %p868, %s39, 2
        %s870 = smul.addr %s869, 9
        %s871 = smul.addr %s870, 8
        %s872 = scalar_lea.vmem %s12, %s871
        %p873 = scmp.lt.s32.totalorder %s39, 2
        %s874 = scalar_select %p873, %s39, 2
        %s875 = scalar_lea.vmem %s13, %s874
        %p876 = scmp.lt.s32.totalorder %s39, 2
        %s877 = scalar_select %p876, %s39, 2
        %s878 = smul.addr %s877, 4
        %s879 = smul.addr %s878, 8
        %s880 = scalar_lea.vmem %s14, %s879
        %p881 = scmp.lt.s32.totalorder %s39, 2
        %s882 = scalar_select %p881, %s39, 2
        %s883 = scalar_lea.vmem %s15, %s882
        %p884 = scmp.lt.s32.totalorder %s39, 2
        %s885 = scalar_select %p884, %s39, 2
        %s886 = smul.addr %s885, 4
        %s887 = smul.addr %s886, 8
        %s888 = scalar_lea.vmem %s16, %s887
        %p889 = scmp.lt.s32.totalorder %s39, 2
        %s890 = scalar_select %p889, %s39, 2
        %s891 = scalar_lea.vmem %s17, %s890
        %p892 = scmp.lt.s32.totalorder %s39, 2
        %s893 = scalar_select %p892, %s39, 2
        %s894 = scalar_lea.vmem %s18, %s893
        %p895 = scmp.lt.s32.totalorder %s39, 2
        %s896 = scalar_select %p895, %s39, 2
        %s897 = smul.addr %s896, 8
        %s898 = smul.addr %s897, 8
        %s899 = scalar_lea.vmem %s19, %s898
        %p900 = scmp.lt.s32.totalorder %s39, 2
        %s901 = scalar_select %p900, %s39, 2
        %s902 = scalar_lea.vmem %s20, %s901
        %p903 = scmp.lt.s32.totalorder %s39, 2
        %s904 = scalar_select %p903, %s39, 2
        %s905 = smul.addr %s904, 4
        %s906 = smul.addr %s905, 8
        %s907 = scalar_lea.vmem %s21, %s906
        %p908 = scmp.lt.s32.totalorder %s39, 2
        %s909 = scalar_select %p908, %s39, 2
        %s910 = scalar_lea.vmem %s22, %s909
        %p911 = scmp.eq.s32.totalorder %s39, 0
        // Predicated region
        $region113: #{egnn_encoder_forward.1} parent=111 // pred_check
          %p912 = pneg %p911
        $region114: #{egnn_encoder_forward.1} parent=111 // pred_check_branch
          %914 = sbr.rel (%p912) target = $region116
        $region115: #{egnn_encoder_forward.1} parent=111 // pred_region
          %v915 = vlaneseq
          %v916 = vshrl.u32 %v915, 7
          %v917 = vld [vmem:[%s0] sm:$0x1]
          %v918 = vperm.slane %v917, 0
          %vm919 = vcmp.eq.s32.totalorder %v916, %v918
          %v920 = vsel %vm919, 1, 0
          %v921 = vcvt.s32.f32 %v920
          %vm922 = vcmask 130048
          %v923 = vsel %vm922, %v921, 0.0
          %924 = vadd.xlane.f32.xlu0 %v923
          %v925 = vpop.xlane.xlu0 %924
          %v926 = vmax.f32 %v925, 1.0
          %v927 = vrcp.pop %v926
          %v928 = vmul.f32 %v926, %v927
          %v929 = vsub.f32 1.0, %v928
          %v930 = vmul.f32 %v927, %v929
          %v931 = vadd.f32 %v927, %v930
          %vm932 = vweird.f32 %v926
          %vm933 = vweird.f32 %v927
          %vm934 = vmor %vm932, %vm933
          %v935 = vsel %vm934, %v927, %v931
          %v936 = vand.u32 2147483647, %v926
          %vm937 = vcmp.eq.f32.partialorder %v936, 8.507059e+37
          %v938 = vand.u32 %v926, 2147483648
          %v939 = vor.u32 1.1754944e-38, %v938
          %v940 = vsel %vm937, %v939, %v935
          %v941 = vmul.f32 %v921, %v940
          %v942 = vld [vmem:[%s5] sm:$0xff]
          %v943 = vld [vmem:[%s5 + $0x8] sm:$0xff]
          %v945 = vsel %vm922, %v941, 0
          %947 = vmatpush.msra.mxu0 0.0
          %948 = vmatpush.msra.mxu0 0.0
          %949 = vmatpush.msra.mxu0 0.0
          %950 = vmatpush.msra.mxu0 0.0
          %951 = vmatpush.msra.mxu0 0.0
          %952 = vmatpush.msra.mxu0 0.0
          %953 = vmatpush.msra.mxu0 0.0
          %954 = vmatpush.msra.mxu0 0.0
          %955 = vmatpush.msra.mxu0 0.0
          %956 = vmatpush.msra.mxu0 0.0
          %957 = vmatpush.msra.mxu0 0.0
          %958 = vmatpush.msra.mxu0 0.0
          %959 = vmatpush.msra.mxu0 0.0
          %960 = vmatpush.msra.mxu0 0.0
          %961 = vmatpush.msra.mxu0 %v943
          %962 = vmatpush.msra.mxu0 %v942
          %963 = vmatmul.f32.gmra.mxu0 %v945
          %v964 = vpop.f32.mrf.mxu0
          %v965 = vadd.f32 0.0, %v964
          %966 = vdwg.mxu0
          %v967 = vld [vmem:[%s6] sm:$0xff]
          %v968 = vld [vmem:[%s6 + $0x8] sm:$0xff]
          %969 = vmatpush.msra.mxu0 0.0
          %970 = vmatpush.msra.mxu0 0.0
          %971 = vmatpush.msra.mxu0 0.0
          %972 = vmatpush.msra.mxu0 0.0
          %973 = vmatpush.msra.mxu0 0.0
          %974 = vmatpush.msra.mxu0 0.0
          %975 = vmatpush.msra.mxu0 0.0
          %976 = vmatpush.msra.mxu0 0.0
          %977 = vmatpush.msra.mxu0 0.0
          %978 = vmatpush.msra.mxu0 0.0
          %979 = vmatpush.msra.mxu0 0.0
          %980 = vmatpush.msra.mxu0 0.0
          %981 = vmatpush.msra.mxu0 0.0
          %982 = vmatpush.msra.mxu0 0.0
          %983 = vmatpush.msra.mxu0 %v968
          %984 = vmatpush.msra.mxu0 %v967
          %985 = vmatmul.f32.gmra.mxu0 %v945
          %v986 = vpop.f32.mrf.mxu0
          %v987 = vadd.f32 0.0, %v986
          %988 = vdwg.mxu0
          %vm989 = vcmask 261120
          %990 = vst.msk [vmem:[#allocation3] sm:$0xff] %vm989, %v965
          %v991 = vld [vmem:[%s8] sm:$0xff]
          %v992 = vld [vmem:[%s8 + $0x8] sm:$0xff]
          %v993 = vld [vmem:[%s8 + $0x10] sm:$0xff]
          %v994 = vld [vmem:[%s8 + $0x18] sm:$0xff]
          %v995 = vld [vmem:[%s9] sm:$0x1]
          %v997 = vperm.slane %v995, 0
          %v1000 = vsel %vm989, %v965, 0
          %1002 = vmatpush.msra.mxu0 0.0
          %1003 = vmatpush.msra.mxu0 0.0
          %1004 = vmatpush.msra.mxu0 0.0
          %1005 = vmatpush.msra.mxu0 0.0
          %1006 = vmatpush.msra.mxu0 0.0
          %1007 = vmatpush.msra.mxu0 0.0
          %1008 = vmatpush.msra.mxu0 0.0
          %1009 = vmatpush.msra.mxu0 0.0
          %1010 = vmatpush.msra.mxu0 0.0
          %1011 = vmatpush.msra.mxu0 0.0
          %1012 = vmatpush.msra.mxu0 0.0
          %1013 = vmatpush.msra.mxu0 0.0
          %1014 = vmatpush.msra.mxu0 %v994
          %1015 = vmatpush.msra.mxu0 %v993
          %1016 = vmatpush.msra.mxu0 %v992
          %1017 = vmatpush.msra.mxu0 %v991
          %1018 = vmatmul.f32.gmra.mxu0 %v1000
          %v1019 = vpop.f32.mrf.mxu0
          %v1020 = vadd.f32 %v997, %v1019
          %1021 = vdwg.mxu0
          %1023 = vrot.lane.b32.xlu0 %v987, 32
          %v1024 = vpop.permute.xlu0 %1023
          %v1026 = vsel %vm989, %v1020, %v1024
          %vm1027 = vcmask 285696
          %1028 = vst.msk [vmem:[#allocation2] sm:$0xff] %vm1027, %v1026
        $region116: #{egnn_encoder_forward.1} parent=111 // pred_fallthru
          _
        %v1029 = vld [vmem:[#allocation2] sm:$0xff]
        %v1030 = vlaneseq
        %v1031 = vand.u32 %v1030, 127
        %v1032 = vld [vmem:[%s1] sm:$0xff]
        %v1033 = vld [vmem:[%s1 + $0x8] sm:$0xff]
        %v1034 = vld [vmem:[%s1 + $0x10] sm:$0xff]
        %1035 = vset.pattern.permute.xlu0 0
        %1036 = vperm.xlu0 %1035, %v1032
        %v1037 = vpop.permute.xlu0 %1036
        %1038 = vset.pattern.permute.xlu0 0
        %1039 = vperm.xlu0 %1038, %v1033
        %v1040 = vpop.permute.xlu0 %1039
        %1041 = vset.pattern.permute.xlu0 0
        %1042 = vperm.xlu0 %1041, %v1034
        %v1043 = vpop.permute.xlu0 %1042
        %vm1044 = vcmp.eq.s32.totalorder %v1031, %v1037
        %vm1045 = vcmp.eq.s32.totalorder %v1031, %v1040
        %vm1046 = vcmp.eq.s32.totalorder %v1031, %v1043
        %v1047 = vsel %vm1044, 1, 0
        %v1048 = vsel %vm1045, 1, 0
        %v1049 = vsel %vm1046, 1, 0
        %v1050 = vcvt.s32.f32 %v1047
        %v1051 = vcvt.s32.f32 %v1048
        %v1052 = vcvt.s32.f32 %v1049
        %v1053 = vld [vmem:[%s2] sm:$0xff]
        %v1054 = vld [vmem:[%s2 + $0x8] sm:$0xff]
        %v1055 = vld [vmem:[%s2 + $0x10] sm:$0xff]
        %1056 = vset.pattern.permute.xlu0 0
        %1057 = vperm.xlu0 %1056, %v1053
        %v1058 = vpop.permute.xlu0 %1057
        %1059 = vset.pattern.permute.xlu0 0
        %1060 = vperm.xlu0 %1059, %v1054
        %v1061 = vpop.permute.xlu0 %1060
        %1062 = vset.pattern.permute.xlu0 0
        %1063 = vperm.xlu0 %1062, %v1055
        %v1064 = vpop.permute.xlu0 %1063
        %vm1065 = vcmp.eq.s32.totalorder %v1031, %v1058
        %vm1066 = vcmp.eq.s32.totalorder %v1031, %v1061
        %vm1067 = vcmp.eq.s32.totalorder %v1031, %v1064
        %v1068 = vsel %vm1065, 1, 0
        %v1069 = vsel %vm1066, 1, 0
        %v1070 = vsel %vm1067, 1, 0
        %v1071 = vcvt.s32.f32 %v1068
        %v1072 = vcvt.s32.f32 %v1069
        %v1073 = vcvt.s32.f32 %v1070
        %v1074 = vlaneseq
        %v1075 = vshrl.u32 %v1074, 7
        %v1076 = vld [vmem:[%s3] sm:$0x1]
        %v1077 = vperm.slane %v1076, 0
        %vm1078 = vcmp.eq.s32.totalorder %v1075, %v1077
        %v1079 = vsel %vm1078, 1, 0
        %v1080 = vcvt.s32.f32 %v1079
        %vm1081 = vcmask 195584
        %v1082 = vsel %vm1081, %v1080, 0.0
        %1083 = vadd.xlane.f32.xlu0 %v1082
        %v1084 = vpop.xlane.xlu0 %1083
        %v1085 = vmax.f32 %v1084, 1.0
        %v1086 = vrcp.pop %v1085
        %v1087 = vmul.f32 %v1085, %v1086
        %v1088 = vsub.f32 1.0, %v1087
        %v1089 = vmul.f32 %v1086, %v1088
        %v1090 = vadd.f32 %v1086, %v1089
        %vm1091 = vweird.f32 %v1085
        %vm1092 = vweird.f32 %v1086
        %vm1093 = vmor %vm1091, %vm1092
        %v1094 = vsel %vm1093, %v1086, %v1090
        %v1095 = vand.u32 2147483647, %v1085
        %vm1096 = vcmp.eq.f32.partialorder %v1095, 8.507059e+37
        %v1097 = vand.u32 %v1085, 2147483648
        %v1098 = vor.u32 1.1754944e-38, %v1097
        %v1099 = vsel %vm1096, %v1098, %v1094
        %v1100 = vmul.f32 1.0, %v1099
        %vm1101 = vcmask 64512
        %v1103 = vsel %vm1101, %v1050, 0
        %v1106 = vsel %vm1101, %v1051, 0
        %v1109 = vsel %vm1101, %v1052, 0
        %1111 = vmatpush.msra.mxu0 0.0
        %1112 = vmatpush.msra.mxu0 0.0
        %1113 = vmatpush.msra.mxu0 0.0
        %1114 = vmatpush.msra.mxu0 0.0
        %1115 = vmatpush.msra.mxu0 0.0
        %1116 = vmatpush.msra.mxu0 0.0
        %1117 = vmatpush.msra.mxu0 0.0
        %1118 = vmatpush.msra.mxu0 0.0
        %1119 = vmatpush.msra.mxu0 0.0
        %1120 = vmatpush.msra.mxu0 0.0
        %1121 = vmatpush.msra.mxu0 0.0
        %1122 = vmatpush.msra.mxu0 0.0
        %1123 = vmatpush.msra.mxu0 0.0
        %1124 = vmatpush.msra.mxu0 0.0
        %1125 = vmatpush.msra.mxu0 0.0
        %1126 = vmatpush.msra.mxu0 %v1029
        %1127 = vmatmul.f32.gmra.mxu0 %v1103
        %v1128 = vpop.f32.mrf.mxu0
        %v1129 = vadd.f32 0.0, %v1128
        %1130 = vmatmul.f32.gmra.mxu0 %v1106
        %v1131 = vpop.f32.mrf.mxu0
        %v1132 = vadd.f32 0.0, %v1131
        %1133 = vmatmul.f32.gmra.mxu0 %v1109
        %v1134 = vpop.f32.mrf.mxu0
        %v1135 = vadd.f32 0.0, %v1134
        %1136 = vdwg.mxu0
        %v1138 = vsel %vm1101, %v1071, 0
        %v1141 = vsel %vm1101, %v1072, 0
        %v1144 = vsel %vm1101, %v1073, 0
        %1146 = vmatpush.msra.mxu0 0.0
        %1147 = vmatpush.msra.mxu0 0.0
        %1148 = vmatpush.msra.mxu0 0.0
        %1149 = vmatpush.msra.mxu0 0.0
        %1150 = vmatpush.msra.mxu0 0.0
        %1151 = vmatpush.msra.mxu0 0.0
        %1152 = vmatpush.msra.mxu0 0.0
        %1153 = vmatpush.msra.mxu0 0.0
        %1154 = vmatpush.msra.mxu0 0.0
        %1155 = vmatpush.msra.mxu0 0.0
        %1156 = vmatpush.msra.mxu0 0.0
        %1157 = vmatpush.msra.mxu0 0.0
        %1158 = vmatpush.msra.mxu0 0.0
        %1159 = vmatpush.msra.mxu0 0.0
        %1160 = vmatpush.msra.mxu0 0.0
        %1161 = vmatpush.msra.mxu0 %v1029
        %1162 = vmatmul.f32.gmra.mxu0 %v1138
        %v1163 = vpop.f32.mrf.mxu0
        %v1164 = vadd.f32 0.0, %v1163
        %1165 = vmatmul.f32.gmra.mxu0 %v1141
        %v1166 = vpop.f32.mrf.mxu0
        %v1167 = vadd.f32 0.0, %v1166
        %1168 = vmatmul.f32.gmra.mxu0 %v1144
        %v1169 = vpop.f32.mrf.mxu0
        %v1170 = vadd.f32 0.0, %v1169
        %1171 = vdwg.mxu0
        %v1172 = vsub.f32 %v1129, %v1164
        %v1173 = vsub.f32 %v1132, %v1167
        %v1174 = vsub.f32 %v1135, %v1170
        %v1175 = vmul.f32 %v1172, %v1172
        %v1176 = vmul.f32 %v1173, %v1173
        %v1177 = vmul.f32 %v1174, %v1174
        %1181 = vrot.lane.b32.xlu0 %v1175, 96
        %v1182 = vpop.permute.xlu0 %1181
        %1183 = vrot.lane.b32.xlu0 %v1176, 96
        %v1184 = vpop.permute.xlu0 %1183
        %1185 = vrot.lane.b32.xlu0 %v1177, 96
        %v1186 = vpop.permute.xlu0 %1185
        %vm1190 = vcmask 23552
        %v1191 = vsel %vm1190, %v1182, 0.0
        %1192 = vadd.xlane.f32.xlu0 %v1191
        %v1193 = vpop.xlane.xlu0 %1192
        %v1194 = vsel %vm1190, %v1184, 0.0
        %1195 = vadd.xlane.f32.xlu0 %v1194
        %v1196 = vpop.xlane.xlu0 %1195
        %v1197 = vsel %vm1190, %v1186, 0.0
        %1198 = vadd.xlane.f32.xlu0 %v1197
        %v1199 = vpop.xlane.xlu0 %1198
        %v1200 = vld [vmem:[%s7] sm:$0xff]
        %v1201 = vld [vmem:[%s7 + $0x8] sm:$0xff]
        %v1202 = vld [vmem:[%s7 + $0x10] sm:$0xff]
        %1206 = vrot.lane.b32.xlu0 %v1164, 32
        %v1207 = vpop.permute.xlu0 %1206
        %1208 = vrot.lane.b32.xlu0 %v1167, 32
        %v1209 = vpop.permute.xlu0 %1208
        %1210 = vrot.lane.b32.xlu0 %v1170, 32
        %v1211 = vpop.permute.xlu0 %1210
        %1218 = vrot.lane.b32.xlu0 %v1200, 65
        %v1219 = vpop.permute.xlu0 %1218
        %1220 = vrot.lane.b32.xlu0 %v1201, 65
        %v1221 = vpop.permute.xlu0 %1220
        %1222 = vrot.lane.b32.xlu0 %v1202, 65
        %v1223 = vpop.permute.xlu0 %1222
        %vm1227 = vcmask 261120
        %v1228 = vsel %vm1227, %v1129, %v1207
        %v1229 = vsel %vm1227, %v1132, %v1209
        %v1230 = vsel %vm1227, %v1135, %v1211
        %vm1231 = vcmask 523264
        %v1232 = vsel %vm1231, %v1228, %v1193
        %v1233 = vsel %vm1231, %v1229, %v1196
        %v1234 = vsel %vm1231, %v1230, %v1199
        %vm1235 = vcmask 531456
        %v1236 = vsel %vm1235, %v1232, %v1219
        %v1237 = vsel %vm1235, %v1233, %v1221
        %v1238 = vsel %vm1235, %v1234, %v1223
        %v1239 = vld [vmem:[%s872] sm:$0xff]
        %v1240 = vld [vmem:[%s872 + $0x8] sm:$0xff]
        %v1241 = vld [vmem:[%s872 + $0x10] sm:$0xff]
        %v1242 = vld [vmem:[%s872 + $0x18] sm:$0xff]
        %v1243 = vld [vmem:[%s872 + $0x20] sm:$0xff]
        %v1244 = vld [vmem:[%s872 + $0x28] sm:$0xff]
        %v1245 = vld [vmem:[%s872 + $0x30] sm:$0xff]
        %v1246 = vld [vmem:[%s872 + $0x38] sm:$0xff]
        %v1247 = vld [vmem:[%s872 + $0x40] sm:$0x1f]
        %v1248 = vld [vmem:[%s875] sm:$0x1]
        %v1250 = vperm.slane %v1248, 0
        %vm1252 = vcmask 564224
        %v1254 = vsel %vm1252, %v1236, 0
        %v1257 = vsel %vm1252, %v1237, 0
        %v1260 = vsel %vm1252, %v1238, 0
        %vm1262 = vcmask 1044480
        %v1264 = vsel %vm1262, %v1247, 0
        %1266 = vmatpush.msra.mxu0 0.0
        %1267 = vmatpush.msra.mxu0 0.0
        %1268 = vmatpush.msra.mxu0 0.0
        %1269 = vmatpush.msra.mxu0 0.0
        %1270 = vmatpush.msra.mxu0 0.0
        %1271 = vmatpush.msra.mxu0 0.0
        %1272 = vmatpush.msra.mxu0 0.0
        %1273 = vmatpush.msra.mxu0 %v1264
        %1274 = vmatpush.msra.mxu0 %v1246
        %1275 = vmatpush.msra.mxu0 %v1245
        %1276 = vmatpush.msra.mxu0 %v1244
        %1277 = vmatpush.msra.mxu0 %v1243
        %1278 = vmatpush.msra.mxu0 %v1242
        %1279 = vmatpush.msra.mxu0 %v1241
        %1280 = vmatpush.msra.mxu0 %v1240
        %1281 = vmatpush.msra.mxu0 %v1239
        %1282 = vmatmul.f32.gmra.mxu0 %v1254
        %v1283 = vpop.f32.mrf.mxu0
        %v1284 = vadd.f32 %v1250, %v1283
        %1285 = vmatmul.f32.gmra.mxu0 %v1257
        %v1286 = vpop.f32.mrf.mxu0
        %v1287 = vadd.f32 %v1250, %v1286
        %1288 = vmatmul.f32.gmra.mxu0 %v1260
        %v1289 = vpop.f32.mrf.mxu0
        %v1290 = vadd.f32 %v1250, %v1289
        %1291 = vdwg.mxu0
        %v1292 = vxor.u32 %v1284, 2147483648
        %v1293 = vxor.u32 %v1287, 2147483648
        %v1294 = vxor.u32 %v1290, 2147483648
        %v1295 = vmul.f32 %v1292, 1.442695
        %v1296 = vpow.pop %v1295
        %v1297 = vmul.f32 %v1293, 1.442695
        %v1298 = vpow.pop %v1297
        %v1299 = vmul.f32 %v1294, 1.442695
        %v1300 = vpow.pop %v1299
        %v1301 = vadd.f32 %v1296, 1.0
        %v1302 = vadd.f32 %v1298, 1.0
        %v1303 = vadd.f32 %v1300, 1.0
        %v1304 = vrcp.pop %v1301
        %v1305 = vmul.f32 %v1301, %v1304
        %v1306 = vsub.f32 1.0, %v1305
        %v1307 = vmul.f32 %v1304, %v1306
        %v1308 = vadd.f32 %v1304, %v1307
        %vm1309 = vweird.f32 %v1301
        %vm1310 = vweird.f32 %v1304
        %vm1311 = vmor %vm1309, %vm1310
        %v1312 = vsel %vm1311, %v1304, %v1308
        %v1313 = vand.u32 2147483647, %v1301
        %vm1314 = vcmp.eq.f32.partialorder %v1313, 8.507059e+37
        %v1315 = vand.u32 %v1301, 2147483648
        %v1316 = vor.u32 1.1754944e-38, %v1315
        %v1317 = vsel %vm1314, %v1316, %v1312
        %v1318 = vmul.f32 1.0, %v1317
        %v1319 = vrcp.pop %v1302
        %v1320 = vmul.f32 %v1302, %v1319
        %v1321 = vsub.f32 1.0, %v1320
        %v1322 = vmul.f32 %v1319, %v1321
        %v1323 = vadd.f32 %v1319, %v1322
        %vm1324 = vweird.f32 %v1302
        %vm1325 = vweird.f32 %v1319
        %vm1326 = vmor %vm1324, %vm1325
        %v1327 = vsel %vm1326, %v1319, %v1323
        %v1328 = vand.u32 2147483647, %v1302
        %vm1329 = vcmp.eq.f32.partialorder %v1328, 8.507059e+37
        %v1330 = vand.u32 %v1302, 2147483648
        %v1331 = vor.u32 1.1754944e-38, %v1330
        %v1332 = vsel %vm1329, %v1331, %v1327
        %v1333 = vmul.f32 1.0, %v1332
        %v1334 = vrcp.pop %v1303
        %v1335 = vmul.f32 %v1303, %v1334
        %v1336 = vsub.f32 1.0, %v1335
        %v1337 = vmul.f32 %v1334, %v1336
        %v1338 = vadd.f32 %v1334, %v1337
        %vm1339 = vweird.f32 %v1303
        %vm1340 = vweird.f32 %v1334
        %vm1341 = vmor %vm1339, %vm1340
        %v1342 = vsel %vm1341, %v1334, %v1338
        %v1343 = vand.u32 2147483647, %v1303
        %vm1344 = vcmp.eq.f32.partialorder %v1343, 8.507059e+37
        %v1345 = vand.u32 %v1303, 2147483648
        %v1346 = vor.u32 1.1754944e-38, %v1345
        %v1347 = vsel %vm1344, %v1346, %v1342
        %v1348 = vmul.f32 1.0, %v1347
        %v1349 = vmul.f32 %v1284, %v1318
        %v1350 = vmul.f32 %v1287, %v1333
        %v1351 = vmul.f32 %v1290, %v1348
        %v1352 = vld [vmem:[%s880] sm:$0xff]
        %v1353 = vld [vmem:[%s880 + $0x8] sm:$0xff]
        %v1354 = vld [vmem:[%s880 + $0x10] sm:$0xff]
        %v1355 = vld [vmem:[%s880 + $0x18] sm:$0xff]
        %v1356 = vld [vmem:[%s883] sm:$0x1]
        %v1358 = vperm.slane %v1356, 0
        %v1361 = vsel %vm1227, %v1349, 0
        %v1364 = vsel %vm1227, %v1350, 0
        %v1367 = vsel %vm1227, %v1351, 0
        %1369 = vmatpush.msra.mxu0 0.0
        %1370 = vmatpush.msra.mxu0 0.0
        %1371 = vmatpush.msra.mxu0 0.0
        %1372 = vmatpush.msra.mxu0 0.0
        %1373 = vmatpush.msra.mxu0 0.0
        %1374 = vmatpush.msra.mxu0 0.0
        %1375 = vmatpush.msra.mxu0 0.0
        %1376 = vmatpush.msra.mxu0 0.0
        %1377 = vmatpush.msra.mxu0 0.0
        %1378 = vmatpush.msra.mxu0 0.0
        %1379 = vmatpush.msra.mxu0 0.0
        %1380 = vmatpush.msra.mxu0 0.0
        %1381 = vmatpush.msra.mxu0 %v1355
        %1382 = vmatpush.msra.mxu0 %v1354
        %1383 = vmatpush.msra.mxu0 %v1353
        %1384 = vmatpush.msra.mxu0 %v1352
        %1385 = vmatmul.f32.gmra.mxu0 %v1361
        %v1386 = vpop.f32.mrf.mxu0
        %v1387 = vadd.f32 %v1358, %v1386
        %1388 = vmatmul.f32.gmra.mxu0 %v1364
        %v1389 = vpop.f32.mrf.mxu0
        %v1390 = vadd.f32 %v1358, %v1389
        %1391 = vmatmul.f32.gmra.mxu0 %v1367
        %v1392 = vpop.f32.mrf.mxu0
        %v1393 = vadd.f32 %v1358, %v1392
        %1394 = vdwg.mxu0
        %v1395 = vxor.u32 %v1387, 2147483648
        %v1396 = vxor.u32 %v1390, 2147483648
        %v1397 = vxor.u32 %v1393, 2147483648
        %v1398 = vmul.f32 %v1395, 1.442695
        %v1399 = vpow.pop %v1398
        %v1400 = vmul.f32 %v1396, 1.442695
        %v1401 = vpow.pop %v1400
        %v1402 = vmul.f32 %v1397, 1.442695
        %v1403 = vpow.pop %v1402
        %v1404 = vadd.f32 %v1399, 1.0
        %v1405 = vadd.f32 %v1401, 1.0
        %v1406 = vadd.f32 %v1403, 1.0
        %v1407 = vrcp.pop %v1404
        %v1408 = vmul.f32 %v1404, %v1407
        %v1409 = vsub.f32 1.0, %v1408
        %v1410 = vmul.f32 %v1407, %v1409
        %v1411 = vadd.f32 %v1407, %v1410
        %vm1412 = vweird.f32 %v1404
        %vm1413 = vweird.f32 %v1407
        %vm1414 = vmor %vm1412, %vm1413
        %v1415 = vsel %vm1414, %v1407, %v1411
        %v1416 = vand.u32 2147483647, %v1404
        %vm1417 = vcmp.eq.f32.partialorder %v1416, 8.507059e+37
        %v1418 = vand.u32 %v1404, 2147483648
        %v1419 = vor.u32 1.1754944e-38, %v1418
        %v1420 = vsel %vm1417, %v1419, %v1415
        %v1421 = vmul.f32 1.0, %v1420
        %v1422 = vrcp.pop %v1405
        %v1423 = vmul.f32 %v1405, %v1422
        %v1424 = vsub.f32 1.0, %v1423
        %v1425 = vmul.f32 %v1422, %v1424
        %v1426 = vadd.f32 %v1422, %v1425
        %vm1427 = vweird.f32 %v1405
        %vm1428 = vweird.f32 %v1422
        %vm1429 = vmor %vm1427, %vm1428
        %v1430 = vsel %vm1429, %v1422, %v1426
        %v1431 = vand.u32 2147483647, %v1405
        %vm1432 = vcmp.eq.f32.partialorder %v1431, 8.507059e+37
        %v1433 = vand.u32 %v1405, 2147483648
        %v1434 = vor.u32 1.1754944e-38, %v1433
        %v1435 = vsel %vm1432, %v1434, %v1430
        %v1436 = vmul.f32 1.0, %v1435
        %v1437 = vrcp.pop %v1406
        %v1438 = vmul.f32 %v1406, %v1437
        %v1439 = vsub.f32 1.0, %v1438
        %v1440 = vmul.f32 %v1437, %v1439
        %v1441 = vadd.f32 %v1437, %v1440
        %vm1442 = vweird.f32 %v1406
        %vm1443 = vweird.f32 %v1437
        %vm1444 = vmor %vm1442, %vm1443
        %v1445 = vsel %vm1444, %v1437, %v1441
        %v1446 = vand.u32 2147483647, %v1406
        %vm1447 = vcmp.eq.f32.partialorder %v1446, 8.507059e+37
        %v1448 = vand.u32 %v1406, 2147483648
        %v1449 = vor.u32 1.1754944e-38, %v1448
        %v1450 = vsel %vm1447, %v1449, %v1445
        %v1451 = vmul.f32 1.0, %v1450
        %v1452 = vmul.f32 %v1387, %v1421
        %v1453 = vmul.f32 %v1390, %v1436
        %v1454 = vmul.f32 %v1393, %v1451
        %v1455 = vld [vmem:[%s888] sm:$0xff]
        %v1456 = vld [vmem:[%s888 + $0x8] sm:$0xff]
        %v1457 = vld [vmem:[%s888 + $0x10] sm:$0xff]
        %v1458 = vld [vmem:[%s888 + $0x18] sm:$0xff]
        %v1459 = vld [vmem:[%s891] sm:$0x1]
        %v1461 = vperm.slane %v1459, 0
        %v1464 = vsel %vm1227, %v1452, 0
        %v1467 = vsel %vm1227, %v1453, 0
        %v1470 = vsel %vm1227, %v1454, 0
        %1472 = vmatpush.msra.mxu0 0.0
        %1473 = vmatpush.msra.mxu0 0.0
        %1474 = vmatpush.msra.mxu0 0.0
        %1475 = vmatpush.msra.mxu0 0.0
        %1476 = vmatpush.msra.mxu0 0.0
        %1477 = vmatpush.msra.mxu0 0.0
        %1478 = vmatpush.msra.mxu0 0.0
        %1479 = vmatpush.msra.mxu0 0.0
        %1480 = vmatpush.msra.mxu0 0.0
        %1481 = vmatpush.msra.mxu0 0.0
        %1482 = vmatpush.msra.mxu0 0.0
        %1483 = vmatpush.msra.mxu0 0.0
        %1484 = vmatpush.msra.mxu0 %v1458
        %1485 = vmatpush.msra.mxu0 %v1457
        %1486 = vmatpush.msra.mxu0 %v1456
        %1487 = vmatpush.msra.mxu0 %v1455
        %1488 = vmatmul.f32.gmra.mxu0 %v1464
        %v1489 = vpop.f32.mrf.mxu0
        %v1490 = vadd.f32 %v1461, %v1489
        %1491 = vmatmul.f32.gmra.mxu0 %v1467
        %v1492 = vpop.f32.mrf.mxu0
        %v1493 = vadd.f32 %v1461, %v1492
        %1494 = vmatmul.f32.gmra.mxu0 %v1470
        %v1495 = vpop.f32.mrf.mxu0
        %v1496 = vadd.f32 %v1461, %v1495
        %1497 = vdwg.mxu0
        %v1498 = vxor.u32 %v1490, 2147483648
        %v1499 = vxor.u32 %v1493, 2147483648
        %v1500 = vxor.u32 %v1496, 2147483648
        %v1501 = vmul.f32 %v1498, 1.442695
        %v1502 = vpow.pop %v1501
        %v1503 = vmul.f32 %v1499, 1.442695
        %v1504 = vpow.pop %v1503
        %v1505 = vmul.f32 %v1500, 1.442695
        %v1506 = vpow.pop %v1505
        %v1507 = vadd.f32 %v1502, 1.0
        %v1508 = vadd.f32 %v1504, 1.0
        %v1509 = vadd.f32 %v1506, 1.0
        %v1510 = vrcp.pop %v1507
        %v1511 = vmul.f32 %v1507, %v1510
        %v1512 = vsub.f32 1.0, %v1511
        %v1513 = vmul.f32 %v1510, %v1512
        %v1514 = vadd.f32 %v1510, %v1513
        %vm1515 = vweird.f32 %v1507
        %vm1516 = vweird.f32 %v1510
        %vm1517 = vmor %vm1515, %vm1516
        %v1518 = vsel %vm1517, %v1510, %v1514
        %v1519 = vand.u32 2147483647, %v1507
        %vm1520 = vcmp.eq.f32.partialorder %v1519, 8.507059e+37
        %v1521 = vand.u32 %v1507, 2147483648
        %v1522 = vor.u32 1.1754944e-38, %v1521
        %v1523 = vsel %vm1520, %v1522, %v1518
        %v1524 = vmul.f32 1.0, %v1523
        %v1525 = vrcp.pop %v1508
        %v1526 = vmul.f32 %v1508, %v1525
        %v1527 = vsub.f32 1.0, %v1526
        %v1528 = vmul.f32 %v1525, %v1527
        %v1529 = vadd.f32 %v1525, %v1528
        %vm1530 = vweird.f32 %v1508
        %vm1531 = vweird.f32 %v1525
        %vm1532 = vmor %vm1530, %vm1531
        %v1533 = vsel %vm1532, %v1525, %v1529
        %v1534 = vand.u32 2147483647, %v1508
        %vm1535 = vcmp.eq.f32.partialorder %v1534, 8.507059e+37
        %v1536 = vand.u32 %v1508, 2147483648
        %v1537 = vor.u32 1.1754944e-38, %v1536
        %v1538 = vsel %vm1535, %v1537, %v1533
        %v1539 = vmul.f32 1.0, %v1538
        %v1540 = vrcp.pop %v1509
        %v1541 = vmul.f32 %v1509, %v1540
        %v1542 = vsub.f32 1.0, %v1541
        %v1543 = vmul.f32 %v1540, %v1542
        %v1544 = vadd.f32 %v1540, %v1543
        %vm1545 = vweird.f32 %v1509
        %vm1546 = vweird.f32 %v1540
        %vm1547 = vmor %vm1545, %vm1546
        %v1548 = vsel %vm1547, %v1540, %v1544
        %v1549 = vand.u32 2147483647, %v1509
        %vm1550 = vcmp.eq.f32.partialorder %v1549, 8.507059e+37
        %v1551 = vand.u32 %v1509, 2147483648
        %v1552 = vor.u32 1.1754944e-38, %v1551
        %v1553 = vsel %vm1550, %v1552, %v1548
        %v1554 = vmul.f32 1.0, %v1553
        %v1555 = vmul.f32 %v1490, %v1524
        %v1556 = vmul.f32 %v1493, %v1539
        %v1557 = vmul.f32 %v1496, %v1554
        %v1558 = vld [vmem:[%s894] sm:$0x1]
        %v1560 = vperm.slane %v1558, 0
        %v1562 = vmul.f32 %v1555, %v1560
        %v1563 = vmul.f32 %v1556, %v1560
        %v1564 = vmul.f32 %v1557, %v1560
        %v1565 = vsel %vm1227, %v1562, 0.0
        %1566 = vadd.xlane.f32.xlu0 %v1565
        %v1567 = vpop.xlane.xlu0 %1566
        %v1568 = vsel %vm1227, %v1563, 0.0
        %1569 = vadd.xlane.f32.xlu0 %v1568
        %v1570 = vpop.xlane.xlu0 %1569
        %v1571 = vsel %vm1227, %v1564, 0.0
        %1572 = vadd.xlane.f32.xlu0 %v1571
        %v1573 = vpop.xlane.xlu0 %1572
        %v1574 = vmul.f32 %v1172, %v1567
        %v1575 = vmul.f32 %v1173, %v1570
        %v1576 = vmul.f32 %v1174, %v1573
        %v1577 = vsel %vm1227, %v1452, %v1574
        %v1578 = vsel %vm1227, %v1453, %v1575
        %v1579 = vsel %vm1227, %v1454, %v1576
        %v1581 = vsel %vm1081, %v1080, 0
        %1583 = vmatpush.msra.mxu0 0.0
        %1584 = vmatpush.msra.mxu0 0.0
        %1585 = vmatpush.msra.mxu0 0.0
        %1586 = vmatpush.msra.mxu0 0.0
        %1587 = vmatpush.msra.mxu0 0.0
        %1588 = vmatpush.msra.mxu0 0.0
        %1589 = vmatpush.msra.mxu0 0.0
        %1590 = vmatpush.msra.mxu0 0.0
        %1591 = vmatpush.msra.mxu0 0.0
        %1592 = vmatpush.msra.mxu0 0.0
        %1593 = vmatpush.msra.mxu0 0.0
        %1594 = vmatpush.msra.mxu0 0.0
        %1595 = vmatpush.msra.mxu0 0.0
        %1596 = vmatpush.msra.mxu0 %v1579
        %1597 = vmatpush.msra.mxu0 %v1578
        %1598 = vmatpush.msra.mxu0 %v1577
        %1599 = vmatmul.f32.gmra.mxu0 %v1581
        %v1600 = vpop.f32.mrf.mxu0
        %v1601 = vadd.f32 0.0, %v1600
        %1602 = vdwg.mxu0
        %v1603 = vmul.f32 %v1601, %v1100
        %v1604 = vadd.f32 %v1029, %v1603
        %1606 = vrot.lane.b32.xlu0 %v1601, 32
        %v1607 = vpop.permute.xlu0 %1606
        %v1609 = vsel %vm1227, %v1029, %v1607
        %v1610 = vld [vmem:[%s899] sm:$0xff]
        %v1611 = vld [vmem:[%s899 + $0x8] sm:$0xff]
        %v1612 = vld [vmem:[%s899 + $0x10] sm:$0xff]
        %v1613 = vld [vmem:[%s899 + $0x18] sm:$0xff]
        %v1614 = vld [vmem:[%s899 + $0x20] sm:$0xff]
        %v1615 = vld [vmem:[%s899 + $0x28] sm:$0xff]
        %v1616 = vld [vmem:[%s899 + $0x30] sm:$0xff]
        %v1617 = vld [vmem:[%s899 + $0x38] sm:$0xff]
        %v1618 = vld [vmem:[%s902] sm:$0x1]
        %v1620 = vperm.slane %v1618, 0
        %v1623 = vsel %vm1231, %v1609, 0
        %1625 = vmatpush.msra.mxu0 0.0
        %1626 = vmatpush.msra.mxu0 0.0
        %1627 = vmatpush.msra.mxu0 0.0
        %1628 = vmatpush.msra.mxu0 0.0
        %1629 = vmatpush.msra.mxu0 0.0
        %1630 = vmatpush.msra.mxu0 0.0
        %1631 = vmatpush.msra.mxu0 0.0
        %1632 = vmatpush.msra.mxu0 0.0
        %1633 = vmatpush.msra.mxu0 %v1617
        %1634 = vmatpush.msra.mxu0 %v1616
        %1635 = vmatpush.msra.mxu0 %v1615
        %1636 = vmatpush.msra.mxu0 %v1614
        %1637 = vmatpush.msra.mxu0 %v1613
        %1638 = vmatpush.msra.mxu0 %v1612
        %1639 = vmatpush.msra.mxu0 %v1611
        %1640 = vmatpush.msra.mxu0 %v1610
        %1641 = vmatmul.f32.gmra.mxu0 %v1623
        %v1642 = vpop.f32.mrf.mxu0
        %v1643 = vadd.f32 %v1620, %v1642
        %1644 = vdwg.mxu0
        %v1645 = vxor.u32 %v1643, 2147483648
        %v1646 = vmul.f32 %v1645, 1.442695
        %v1647 = vpow.pop %v1646
        %v1648 = vadd.f32 %v1647, 1.0
        %v1649 = vrcp.pop %v1648
        %v1650 = vmul.f32 %v1648, %v1649
        %v1651 = vsub.f32 1.0, %v1650
        %v1652 = vmul.f32 %v1649, %v1651
        %v1653 = vadd.f32 %v1649, %v1652
        %vm1654 = vweird.f32 %v1648
        %vm1655 = vweird.f32 %v1649
        %vm1656 = vmor %vm1654, %vm1655
        %v1657 = vsel %vm1656, %v1649, %v1653
        %v1658 = vand.u32 2147483647, %v1648
        %vm1659 = vcmp.eq.f32.partialorder %v1658, 8.507059e+37
        %v1660 = vand.u32 %v1648, 2147483648
        %v1661 = vor.u32 1.1754944e-38, %v1660
        %v1662 = vsel %vm1659, %v1661, %v1657
        %v1663 = vmul.f32 1.0, %v1662
        %v1664 = vmul.f32 %v1643, %v1663
        %v1665 = vld [vmem:[%s907] sm:$0xff]
        %v1666 = vld [vmem:[%s907 + $0x8] sm:$0xff]
        %v1667 = vld [vmem:[%s907 + $0x10] sm:$0xff]
        %v1668 = vld [vmem:[%s907 + $0x18] sm:$0xff]
        %v1669 = vld [vmem:[%s910] sm:$0x1]
        %v1671 = vperm.slane %v1669, 0
        %v1674 = vsel %vm1227, %v1664, 0
        %1676 = vmatpush.msra.mxu0 0.0
        %1677 = vmatpush.msra.mxu0 0.0
        %1678 = vmatpush.msra.mxu0 0.0
        %1679 = vmatpush.msra.mxu0 0.0
        %1680 = vmatpush.msra.mxu0 0.0
        %1681 = vmatpush.msra.mxu0 0.0
        %1682 = vmatpush.msra.mxu0 0.0
        %1683 = vmatpush.msra.mxu0 0.0
        %1684 = vmatpush.msra.mxu0 0.0
        %1685 = vmatpush.msra.mxu0 0.0
        %1686 = vmatpush.msra.mxu0 0.0
        %1687 = vmatpush.msra.mxu0 0.0
        %1688 = vmatpush.msra.mxu0 %v1668
        %1689 = vmatpush.msra.mxu0 %v1667
        %1690 = vmatpush.msra.mxu0 %v1666
        %1691 = vmatpush.msra.mxu0 %v1665
        %1692 = vmatmul.f32.gmra.mxu0 %v1674
        %v1693 = vpop.f32.mrf.mxu0
        %v1694 = vadd.f32 %v1671, %v1693
        %1695 = vdwg.mxu0
        %v1696 = vadd.f32 %v1029, %v1694
        %v1697 = vsel %vm1227, %v1696, %v1604
        %vm1698 = vcmask 285696
        %1699 = vst.msk [vmem:[#allocation2] sm:$0xff] %vm1698, %v1697
        %p1700 = scmp.eq.s32.totalorder %s39, 2
        // Predicated region
        $region117: #{egnn_encoder_forward.1} parent=111 // pred_check
          %p1701 = pneg %p1700
        $region118: #{egnn_encoder_forward.1} parent=111 // pred_check_branch
          %1703 = sbr.rel (%p1701) target = $region120
        $region119: #{egnn_encoder_forward.1} parent=111 // pred_region
          %v1704 = vld [vmem:[%s10] sm:$0xff]
          %v1705 = vld [vmem:[%s10 + $0x8] sm:$0xff]
          %v1706 = vld [vmem:[%s10 + $0x10] sm:$0xff]
          %v1707 = vld [vmem:[%s10 + $0x18] sm:$0xff]
          %v1708 = vld [vmem:[%s11] sm:$0x1]
          %v1710 = vperm.slane %v1708, 0
          %v1713 = vsel %vm1227, %v1696, 0
          %1715 = vmatpush.msra.mxu0 0.0
          %1716 = vmatpush.msra.mxu0 0.0
          %1717 = vmatpush.msra.mxu0 0.0
          %1718 = vmatpush.msra.mxu0 0.0
          %1719 = vmatpush.msra.mxu0 0.0
          %1720 = vmatpush.msra.mxu0 0.0
          %1721 = vmatpush.msra.mxu0 0.0
          %1722 = vmatpush.msra.mxu0 0.0
          %1723 = vmatpush.msra.mxu0 0.0
          %1724 = vmatpush.msra.mxu0 0.0
          %1725 = vmatpush.msra.mxu0 0.0
          %1726 = vmatpush.msra.mxu0 0.0
          %1727 = vmatpush.msra.mxu0 %v1707
          %1728 = vmatpush.msra.mxu0 %v1706
          %1729 = vmatpush.msra.mxu0 %v1705
          %1730 = vmatpush.msra.mxu0 %v1704
          %1731 = vmatmul.f32.gmra.mxu0 %v1713
          %v1732 = vpop.f32.mrf.mxu0
          %v1733 = vadd.f32 %v1710, %v1732
          %1734 = vdwg.mxu0
          %v1735 = vmul.f32 %v1733, %v1733
          %v1736 = vsel %vm1227, %v1735, 0.0
          %1737 = vadd.xlane.f32.xlu0 %v1736
          %v1738 = vpop.xlane.xlu0 %1737
          %v1739 = vmax.f32 %v1738, 1e-24
          %v1740 = vrsqrt.pop %v1739
          %v1741 = vmul.f32 %v1740, %v1739
          %v1742 = vmul.f32 %v1741, %v1740
          %v1743 = vmul.f32 0.5, %v1742
          %v1744 = vsub.f32 1.5, %v1743
          %v1745 = vmul.f32 %v1740, %v1744
          %vm1746 = vweird.f32 %v1739
          %vm1747 = vweird.f32 %v1740
          %vm1748 = vmor %vm1746, %vm1747
          %v1749 = vsel %vm1748, %v1740, %v1745
          %v1750 = vmul.f32 %v1733, %v1749
          %1751 = vst.msk [vmem:[#allocation5] sm:$0xff] %vm1227, %v1750
          %v1752 = vld [vmem:[%s4] sm:$0x1]
          %v1753 = vperm.slane %v1752, 0
          %vm1754 = vcmp.eq.s32.totalorder %v1075, %v1753
          %v1755 = vsel %vm1754, 1, 0
          %v1756 = vcvt.s32.f32 %v1755
          %v1758 = vsel %vm1101, %v1756, 0
          %1760 = vmatpush.msra.mxu0 0.0
          %1761 = vmatpush.msra.mxu0 0.0
          %1762 = vmatpush.msra.mxu0 0.0
          %1763 = vmatpush.msra.mxu0 0.0
          %1764 = vmatpush.msra.mxu0 0.0
          %1765 = vmatpush.msra.mxu0 0.0
          %1766 = vmatpush.msra.mxu0 0.0
          %1767 = vmatpush.msra.mxu0 0.0
          %1768 = vmatpush.msra.mxu0 0.0
          %1769 = vmatpush.msra.mxu0 0.0
          %1770 = vmatpush.msra.mxu0 0.0
          %1771 = vmatpush.msra.mxu0 0.0
          %1772 = vmatpush.msra.mxu0 0.0
          %1773 = vmatpush.msra.mxu0 0.0
          %1774 = vmatpush.msra.mxu0 0.0
          %1775 = vmatpush.msra.mxu0 %v1750
          %1776 = vmatmul.f32.gmra.mxu0 %v1758
          %v1777 = vpop.f32.mrf.mxu0
          %v1778 = vadd.f32 0.0, %v1777
          %1779 = vdwg.mxu0
          %v1780 = vmul.f32 %v1778, %v1778
          %vm1781 = vcmask 254976
          %v1782 = vsel %vm1781, %v1780, 0.0
          %1783 = vadd.xlane.f32.xlu0 %v1782
          %v1784 = vpop.xlane.xlu0 %1783
          %v1785 = vmax.f32 %v1784, 1e-24
          %v1786 = vrsqrt.pop %v1785
          %v1787 = vmul.f32 %v1786, %v1785
          %v1788 = vmul.f32 %v1787, %v1786
          %v1789 = vmul.f32 0.5, %v1788
          %v1790 = vsub.f32 1.5, %v1789
          %v1791 = vmul.f32 %v1786, %v1790
          %vm1792 = vweird.f32 %v1785
          %vm1793 = vweird.f32 %v1786
          %vm1794 = vmor %vm1792, %vm1793
          %v1795 = vsel %vm1794, %v1786, %v1791
          %v1796 = vmul.f32 %v1778, %v1795
          %1797 = vst.msk [vmem:[#allocation7] sm:$0x3] %vm1781, %v1796
        $region120: #{egnn_encoder_forward.1} parent=111 // pred_fallthru
          _
        // Predicated region
        $region121: #{egnn_encoder_forward.1} parent=111 // pred_check
          %p1798 = pneg %p590
        $region122: #{egnn_encoder_forward.1} parent=111 // pred_check_branch
          %1800 = sbr.rel (%p1798) target = $region124
        $region123: #{egnn_encoder_forward.1} parent=111 // pred_region
          %1802 = vsyncadd [#allocation4], 0
          %s1804 = sshll.u32 [#allocation3], 4
          %s1805 = int_to_ptr.vmem [resolvable:$true] %s1804
          %s1806 = sshll.u32 %s23, 4
          %s1807 = int_to_ptr.hbm [resolvable:$true] %s1806
          %1809 = dma.vmem_to_hbm [thread:$0]  %s1805, 128, %s1807, [#allocation4]
        $region124: #{egnn_encoder_forward.1} parent=111 // pred_fallthru
          _
        // Predicated region
        $region125: #{egnn_encoder_forward.1} parent=111 // pred_check
          %p1810 = pneg %p611
        $region126: #{egnn_encoder_forward.1} parent=111 // pred_check_branch
          %1812 = sbr.rel (%p1810) target = $region128
        $region127: #{egnn_encoder_forward.1} parent=111 // pred_region
          %1814 = vsyncadd [#allocation6], 0
          %s1816 = sshll.u32 [#allocation5], 4
          %s1817 = int_to_ptr.vmem [resolvable:$true] %s1816
          %s1818 = sshll.u32 %s24, 4
          %s1819 = int_to_ptr.hbm [resolvable:$true] %s1818
          %1821 = dma.vmem_to_hbm [thread:$0]  %s1817, 128, %s1819, [#allocation6]
        $region128: #{egnn_encoder_forward.1} parent=111 // pred_fallthru
          _
        // Predicated region
        $region129: #{egnn_encoder_forward.1} parent=111 // pred_check
          %p1822 = pneg %p632
        $region130: #{egnn_encoder_forward.1} parent=111 // pred_check_branch
          %1824 = sbr.rel (%p1822) target = $region132
        $region131: #{egnn_encoder_forward.1} parent=111 // pred_region
          %1826 = vsyncadd [#allocation6], 0
          %s1828 = sshll.u32 [#allocation7], 4
          %s1829 = int_to_ptr.vmem [resolvable:$true] %s1828
          %s1830 = sshll.u32 %s25, 4
          %s1831 = int_to_ptr.hbm [resolvable:$true] %s1830
          %1833 = dma.vmem_to_hbm [thread:$0]  %s1829, 32, %s1831, [#allocation6]
        $region132: #{egnn_encoder_forward.1} parent=111 // pred_fallthru
          _
        // Predicated region
        $region133: #{egnn_encoder_forward.1} parent=111 // pred_check
          %p1834 = pneg %p590
        $region134: #{egnn_encoder_forward.1} parent=111 // pred_check_branch
          %1836 = sbr.rel (%p1834) target = $region136
        $region135: #{egnn_encoder_forward.1} parent=111 // pred_region
          %1838 = dma.done [#allocation4], 128
        $region136: #{egnn_encoder_forward.1} parent=111 // pred_fallthru
          _
        // Predicated region
        $region137: #{egnn_encoder_forward.1} parent=111 // pred_check
          %p1839 = pneg %p611
        $region138: #{egnn_encoder_forward.1} parent=111 // pred_check_branch
          %1841 = sbr.rel (%p1839) target = $region140
        $region139: #{egnn_encoder_forward.1} parent=111 // pred_region
          %1843 = dma.done [#allocation6], 128
        $region140: #{egnn_encoder_forward.1} parent=111 // pred_fallthru
          _
        // Predicated region
        $region141: #{egnn_encoder_forward.1} parent=111 // pred_check
          %p1844 = pneg %p632
        $region142: #{egnn_encoder_forward.1} parent=111 // pred_check_branch
          %1846 = sbr.rel (%p1844) target = $region144
        $region143: #{egnn_encoder_forward.1} parent=111 // pred_region
          %1848 = dma.done [#allocation6], 32
        $region144: #{egnn_encoder_forward.1} parent=111 // pred_fallthru
          _
      $region112: #{egnn_encoder_forward.1} parent=5 // pred_fallthru
        _
      %p1849 = scmp.le.s32.totalorder 2, %s34
      // Predicated region
      $region145: #{egnn_encoder_forward.1} parent=5 // pred_check
        %p1850 = pneg %p1849
      $region146: #{egnn_encoder_forward.1} parent=5 // pred_check_branch
        %1852 = sbr.rel (%p1850) target = $region148
      $region147: #{egnn_encoder_forward.1} parent=5 // pred_region
        %s1853 = ssub.s32 %s34, 2
      $region148: #{egnn_encoder_forward.1} parent=5 // pred_fallthru
        _
    $region6: #{egnn_encoder_forward.1} parent=1 // loop_footer
      %s38 = sadd.s32 1, %s34
    $region7: #{egnn_encoder_forward.1} parent=1 // loop_footer_branch
      %33 = sbr.rel target = $region3
    $region8: #{egnn_encoder_forward.1} parent=1 // loop_exit
      _
    %1854 = vsyncpa [#allocation4], 1
    %s1855 = scalar_lea.sflag [#allocation4], 1
    %1856 = vsyncpa %s1855, 1
    %1857 = vsyncpa [#allocation6], 1

</llo_original>
